<compile_context>
chip_gen: v5e
topology: v5e:2x2
jax: 0.10.0
libtpu: 0.0.40
codegen_flags: <defaults>
</compile_context>

<pallas_src>
import functools

import jax
import jax.numpy as jnp
from jax import lax
from jax.experimental import pallas as pl
from jax.experimental.pallas import tpu as pltpu

# ----------------------------- model sizes ---------------------------------
VOCAB_VALUE = 12      # vocab_value_size
VALUE_DIM   = 16
VOCAB_TYPE  = 10      # vocab_type_size
TYPE_DIM    = 16
HIDDEN      = 32      # hidden_dim
BATCH       = 1       # the PyTorch code hard-assumes batch 1
CONTEXT_WIN = 8       # context_window
SEQ_LEN     = 16      # sequence length
IN_DIM      = VALUE_DIM + TYPE_DIM

assert SEQ_LEN >= CONTEXT_WIN, "Mt slicing requires SEQ_LEN >= CONTEXT_WIN"
assert 4 * HIDDEN == 128, "slab lane width assumes 4*HIDDEN == 128"

# ----------------------- packed-constant-slab layout ------------------------
LANES   = 4 * HIDDEN                      # 128
R_VAL   = 0                               # (VOCAB_VALUE, 4H)  value_emb @ Wih_val
R_TYP   = R_VAL + VOCAB_VALUE             # (VOCAB_TYPE, 4H)   type_emb @ Wih_typ + b
R_WHH   = R_TYP + VOCAB_TYPE              # (H, 4H)            W_hh^T
R_SCALE = R_WHH + HIDDEN                  # (1, 4H)            gate activation scale
R_SHIFT = R_SCALE + 1                     # (1, 4H)            gate activation shift
R_WM    = R_SHIFT + 1                     # (H, H)  padded to 128 lanes
R_W1    = R_WM + HIDDEN                   # (H, H)  padded
R_WGS   = R_W1 + HIDDEN                   # (2H, H+1) padded  [Wg^T | Ws^T]
R_WV    = R_WGS + 2 * HIDDEN              # (H, V)  padded
R_BVS   = R_WV + HIDDEN                   # (1, V+1) padded   [bv | bs]
SLAB_ROWS_RAW = R_BVS + 1
SLAB_ROWS = ((SLAB_ROWS_RAW + 7) // 8) * 8


def _log_softmax_row(x):
    m = jnp.max(x, axis=1, keepdims=True)
    lse = jnp.log(jnp.sum(jnp.exp(x - m), axis=1, keepdims=True)) + m
    return x - lse


# ------------------------------- kernel ------------------------------------
def _main_model_kernel(sv_ref, st_ref, slab_ref, hc0_ref, out_ref):
    f32 = jnp.float32
    H, CW, V, SEQ = HIDDEN, CONTEXT_WIN, VOCAB_VALUE, SEQ_LEN

    whh   = slab_ref[R_WHH:R_WHH + H, :]          # (H, 4H)
    scale = slab_ref[R_SCALE:R_SCALE + 1, :]      # (1, 4H) sigmoid/tanh lane fold
    shift = slab_ref[R_SHIFT:R_SHIFT + 1, :]      # (1, 4H)

    # ---- Fused embedding gather + input projection (off the serial chain) --
    # xw[t] = value_emb[sv[t]] @ Wih_val + type_emb[st[t]] @ Wih_typ + b,
    # read as two pre-projected (1, 4H) rows from the slab.
    xw = []
    for t in range(SEQ):
        vi = sv_ref[t]
        ti = st_ref[t]
        xw.append(slab_ref[pl.ds(R_VAL + vi, 1), :]
                  + slab_ref[pl.ds(R_TYP + ti, 1), :])

    # ---- LSTM recurrence, fully unrolled, state carried in registers -------
    h = hc0_ref[0:1, :]                           # (1, H)
    c = hc0_ref[1:2, :]                           # (1, H)
    hist = []                                     # last CW hidden states, in regs
    for t in range(SEQ):
        gates = xw[t] + jnp.dot(h, whh, preferred_element_type=f32)   # (1, 4H)
        # sigmoid(x) = 0.5*tanh(0.5x)+0.5 on i/f/o lanes; tanh(x) on g lanes.
        act = jnp.tanh(gates * scale) * scale + shift                 # 1 EUP push
        c = act[:, H:2 * H] * c + act[:, 0:H] * act[:, 2 * H:3 * H]
        h = act[:, 3 * H:4 * H] * jnp.tanh(c)
        if t >= SEQ - CW:
            hist.append(h)

    hn = h                                        # (1, H)
    Mt = jnp.concatenate(hist, axis=0)            # (CW, H)

    # ---- Context attention --------------------------------------------------
    wm = slab_ref[R_WM:R_WM + H, 0:H]             # (H, H)
    w1 = slab_ref[R_W1:R_W1 + H, 0:H]             # (H, H)
    lin1 = jnp.dot(hn, w1, preferred_element_type=f32)                # (1, H)
    tanh_pre = jnp.tanh(
        jnp.dot(Mt, wm, preferred_element_type=f32) + lin1)           # (CW, H)
    # At = tanh_pre @ ones(H,1), produced directly in row layout (1, CW) via
    # a transposed contraction (no explicit transpose).
    v_ones = jnp.ones((H, 1), f32)
    At = lax.dot_general(v_ones, tanh_pre,
                         dimension_numbers=(((0,), (1,)), ((), ())),
                         preferred_element_type=f32)                  # (1, CW)
    alphat = _log_softmax_row(At)                                     # (1, CW)
    # NOTE: faithful to the PyTorch code, ct mixes Mt with *log*-softmax weights.
    ct = jnp.dot(alphat, Mt, preferred_element_type=f32)              # (1, H)

    # ---- Parent attention + pointer gate (Wg | Ws packed) -------------------
    wgs_h = slab_ref[R_WGS:R_WGS + H, 0:H + 1]            # h-part rows
    wgs_c = slab_ref[R_WGS + H:R_WGS + 2 * H, 0:H + 1]    # ct-part rows
    gs = (jnp.dot(hn, wgs_h, preferred_element_type=f32)
          + jnp.dot(ct, wgs_c, preferred_element_type=f32))           # (1, H+1)
    Gt = jnp.tanh(gs[:, 0:H])                                         # (1, H)
    bvs = slab_ref[R_BVS:R_BVS + 1, 0:V + 1]                          # (1, V+1)
    st_gate = 0.5 * jnp.tanh(0.5 * (gs[:, H:H + 1] + bvs[:, V:V + 1])) + 0.5
    logits = (jnp.dot(Gt, slab_ref[R_WV:R_WV + H, 0:V],
                      preferred_element_type=f32) + bvs[:, 0:V])      # (1, V)
    yt_value = _log_softmax_row(logits)

    # ---- Single lane-dense output store -------------------------------------
    out_ref[...] = jnp.concatenate(
        [st_gate * yt_value, (1.0 - st_gate) * alphat], axis=1)


# --------------------------- one-time param prep ----------------------------
def prepare_params(params):
    """Transpose / pre-project / pack everything into ONE f32 slab."""
    f32 = jnp.float32
    H = HIDDEN

    wih_t = params["w_ih"].T.astype(f32)                              # (D, 4H)
    b = (params["b_ih"] + params["b_hh"]).reshape(1, 4 * H).astype(f32)
    val_proj = params["value_emb"].astype(f32) @ wih_t[:VALUE_DIM]    # (Vv, 4H)
    typ_proj = params["type_emb"].astype(f32) @ wih_t[VALUE_DIM:] + b # (Vt, 4H)
    whh_t = params["w_hh"].T.astype(f32)                              # (H, 4H)

    # Per-lane activation folding constants (PyTorch gate order i, f, g, o):
    #   sigmoid lanes:  0.5 * tanh(0.5 x) + 0.5  -> scale 0.5, shift 0.5
    #   tanh (g) lanes: tanh(x)                  -> scale 1.0, shift 0.0
    lane = jnp.arange(4 * H)
    is_g = (lane >= 2 * H) & (lane < 3 * H)
    scale = jnp.where(is_g, 1.0, 0.5).astype(f32).reshape(1, 4 * H)
    shift = jnp.where(is_g, 0.0, 0.5).astype(f32).reshape(1, 4 * H)

    def pad_lanes(x):
        x = jnp.asarray(x, f32)
        return jnp.pad(x, ((0, 0), (0, LANES - x.shape[1])))

    wm   = pad_lanes(params["wm"])                                    # (H, 128)
    w1_t = pad_lanes(params["w1"].T)                                  # (H, 128)
    wgs  = pad_lanes(jnp.concatenate([params["wg"].T, params["ws"].T],
                                     axis=1))                         # (2H, 128)
    wv_t = pad_lanes(params["wv"].T)                                  # (H, 128)
    bvs  = pad_lanes(jnp.concatenate([params["bv"], params["bs"]]
                                     ).reshape(1, VOCAB_VALUE + 1))   # (1, 128)

    slab = jnp.concatenate(
        [val_proj, typ_proj, whh_t, scale, shift, wm, w1_t, wgs, wv_t, bvs],
        axis=0)
    assert slab.shape == (SLAB_ROWS_RAW, LANES)
    slab = jnp.pad(slab, ((0, SLAB_ROWS - SLAB_ROWS_RAW), (0, 0)))
    return {"slab": slab}


# ------------------------------- wrapper ------------------------------------
def main_model_forward(prep, sent_values, sent_types, h0, c0):
    hc0 = jnp.concatenate(
        [h0.reshape(1, HIDDEN), c0.reshape(1, HIDDEN)], axis=0
    ).astype(jnp.float32)                                             # (2, H)

    grid_spec = pltpu.PrefetchScalarGridSpec(
        num_scalar_prefetch=2,
        grid=(1,),
        in_specs=[
            pl.BlockSpec((SLAB_ROWS, LANES), lambda i, sv, st: (0, 0)),
            pl.BlockSpec((2, HIDDEN), lambda i, sv, st: (0, 0)),
        ],
        out_specs=pl.BlockSpec((1, VOCAB_VALUE + CONTEXT_WIN),
                               lambda i, sv, st: (0, 0)),
    )

    cost = pl.CostEstimate(flops=260_000, transcendentals=3_000,
                           bytes_accessed=130_000)

    return pl.pallas_call(
        _main_model_kernel,
        out_shape=jax.ShapeDtypeStruct((1, VOCAB_VALUE + CONTEXT_WIN),
                                       jnp.float32),
        grid_spec=grid_spec,
        compiler_params=pltpu.CompilerParams(
            dimension_semantics=("arbitrary",)),
        cost_estimate=cost,
    )(sent_values.astype(jnp.int32), sent_types.astype(jnp.int32),
      prep["slab"], hc0)


# ------------------------- pure-JAX reference --------------------------------
def reference_forward(params, sent_values, sent_types, h0, c0):
    emb = jnp.concatenate(
        [params["value_emb"][sent_values], params["type_emb"][sent_types]], axis=1)
    H = HIDDEN
    h = h0.reshape(1, H)
    c = c0.reshape(1, H)
    hist = []
    for t in range(SEQ_LEN):
        x = emb[t:t + 1]
        gates = (x @ params["w_ih"].T + params["b_ih"]
                 + h @ params["w_hh"].T + params["b_hh"])
        i_g = jax.nn.sigmoid(gates[:, 0 * H:1 * H])
        f_g = jax.nn.sigmoid(gates[:, 1 * H:2 * H])
        g_g = jnp.tanh(gates[:, 2 * H:3 * H])
        o_g = jax.nn.sigmoid(gates[:, 3 * H:4 * H])
        c = f_g * c + i_g * g_g
        h = o_g * jnp.tanh(c)
        hist.append(h)
    out = jnp.concatenate(hist, axis=0)
    Mt = out[-CONTEXT_WIN:]
    lin1 = h @ params["w1"].T
    At = jnp.tanh(Mt @ params["wm"] + lin1) @ jnp.ones((H, 1), jnp.float32)
    alphat = jax.nn.log_softmax(At.reshape(1, -1), axis=1)
    ct = alphat @ Mt
    hc_cat = jnp.concatenate([h, ct], axis=1)
    Gt = jnp.tanh(hc_cat @ params["wg"].T)
    yt_value = jax.nn.log_softmax(Gt @ params["wv"].T + params["bv"], axis=1)
    st = jax.nn.sigmoid(hc_cat @ params["ws"].T + params["bs"])
    return jnp.concatenate([st * yt_value, (1.0 - st) * alphat], axis=1)


# --------------------------------- main --------------------------------------
def _init_params(key):
    ks = jax.random.split(key, 12)
    f32 = jnp.float32
    return {
        "value_emb": 0.1 * jax.random.normal(ks[0], (VOCAB_VALUE, VALUE_DIM), f32),
        "type_emb":  0.1 * jax.random.normal(ks[1], (VOCAB_TYPE, TYPE_DIM), f32),
        "w_ih": 0.1 * jax.random.normal(ks[2], (4 * HIDDEN, IN_DIM), f32),
        "w_hh": 0.1 * jax.random.normal(ks[3], (4 * HIDDEN, HIDDEN), f32),
        "b_ih": 0.1 * jax.random.normal(ks[4], (4 * HIDDEN,), f32),
        "b_hh": 0.1 * jax.random.normal(ks[5], (4 * HIDDEN,), f32),
        # Context_atten.Wm is explicitly initialized to ones in the PyTorch code.
        "wm": jnp.ones((HIDDEN, HIDDEN), f32),
        "w1": 0.1 * jax.random.normal(ks[6], (HIDDEN, HIDDEN), f32),
        "wg": 0.1 * jax.random.normal(ks[7], (HIDDEN, 2 * HIDDEN), f32),
        "wv": 0.1 * jax.random.normal(ks[8], (VOCAB_VALUE, HIDDEN), f32),
        "bv": 0.1 * jax.random.normal(ks[9], (VOCAB_VALUE,), f32),
        "ws": 0.1 * jax.random.normal(ks[10], (1, 2 * HIDDEN), f32),
        "bs": 0.1 * jax.random.normal(ks[11], (1,), f32),
    }


if __name__ == "__main__":
    key = jax.random.PRNGKey(0)
    kp, kv, kt, kh, kc = jax.random.split(key, 5)

    params = _init_params(kp)
    prep = jax.tree_util.tree_map(jax.block_until_ready, prepare_params(params))

    sent_values = jax.random.randint(kv, (SEQ_LEN,), 0, VOCAB_VALUE)
    sent_types  = jax.random.randint(kt, (SEQ_LEN,), 0, VOCAB_TYPE)
    # hc as produced by main_model.initHidden has shape (1, batch, hidden);
    # use small random values to exercise the recurrence.
    h0 = 0.1 * jax.random.normal(kh, (1, BATCH, HIDDEN), jnp.float32)
    c0 = 0.1 * jax.random.normal(kc, (1, BATCH, HIDDEN), jnp.float32)

    fwd = jax.jit(main_model_forward)
    yt = fwd(prep, sent_values, sent_types, h0, c0)
    yt = jax.block_until_ready(yt)

    ref = reference_forward(params, sent_values, sent_types, h0, c0)
    assert yt.shape == (1, VOCAB_VALUE + CONTEXT_WIN)
    assert jnp.allclose(yt, ref, atol=1e-2, rtol=1e-2), (yt, ref)

    print("KERNEL_OK")
</pallas_src>

<mosaic_0001>
module attributes {stable_mosaic.version = 11 : i64} {
  func.func @_main_model_kernel(%arg0: i32, %arg1: memref<16xi32, #tpu.memory_space<smem>>, %arg2: memref<16xi32, #tpu.memory_space<smem>>, %arg3: memref<224x128xf32, #tpu.memory_space<vmem>>, %arg4: memref<2x32xf32, #tpu.memory_space<vmem>>, %arg5: memref<1x20xf32, #tpu.memory_space<vmem>>) attributes {dimension_semantics = [#tpu.dimension_semantics<arbitrary>], iteration_bounds = array<i64: 1>, scalar_prefetch = 2 : i64, scratch_operands = 0 : i64, tpu.core_type = #tpu.core_type<tc>, window_params = [{pipeline_mode = #tpu.pipeline_mode<synchronous>, transform_indices = @transform_0, window_bounds = array<i64: 224, 128>}, {pipeline_mode = #tpu.pipeline_mode<synchronous>, transform_indices = @transform_1, window_bounds = array<i64: 2, 32>}, {pipeline_mode = #tpu.pipeline_mode<synchronous>, transform_indices = @transform_2, window_bounds = array<i64: 1, 20>}]} {
    %c22 = arith.constant 22 : index
    %c0 = arith.constant 0 : index
    %0 = vector.load %arg3[%c22, %c0] : memref<224x128xf32, #tpu.memory_space<vmem>>, vector<32x128xf32>
    %c54 = arith.constant 54 : index
    %c0_0 = arith.constant 0 : index
    %1 = vector.load %arg3[%c54, %c0_0] : memref<224x128xf32, #tpu.memory_space<vmem>>, vector<1x128xf32>
    %c55 = arith.constant 55 : index
    %c0_1 = arith.constant 0 : index
    %2 = vector.load %arg3[%c55, %c0_1] : memref<224x128xf32, #tpu.memory_space<vmem>>, vector<1x128xf32>
    %c0_2 = arith.constant 0 : index
    %3 = memref.load %arg1[%c0_2] : memref<16xi32, #tpu.memory_space<smem>>
    %c0_3 = arith.constant 0 : index
    %4 = memref.load %arg2[%c0_3] : memref<16xi32, #tpu.memory_space<smem>>
    %c0_i32 = arith.constant 0 : i32
    %5 = arith.addi %c0_i32, %3 : i32
    %6 = arith.index_cast %5 : i32 to index
    %c0_4 = arith.constant 0 : index
    %7 = vector.load %arg3[%6, %c0_4] : memref<224x128xf32, #tpu.memory_space<vmem>>, vector<1x128xf32>
    %c12_i32 = arith.constant 12 : i32
    %8 = arith.addi %c12_i32, %4 : i32
    %9 = arith.index_cast %8 : i32 to index
    %c0_5 = arith.constant 0 : index
    %10 = vector.load %arg3[%9, %c0_5] : memref<224x128xf32, #tpu.memory_space<vmem>>, vector<1x128xf32>
    %11 = arith.addf %7, %10 : vector<1x128xf32>
    %c1 = arith.constant 1 : index
    %12 = memref.load %arg1[%c1] : memref<16xi32, #tpu.memory_space<smem>>
    %c1_6 = arith.constant 1 : index
    %13 = memref.load %arg2[%c1_6] : memref<16xi32, #tpu.memory_space<smem>>
    %c0_i32_7 = arith.constant 0 : i32
    %14 = arith.addi %c0_i32_7, %12 : i32
    %15 = arith.index_cast %14 : i32 to index
    %c0_8 = arith.constant 0 : index
    %16 = vector.load %arg3[%15, %c0_8] : memref<224x128xf32, #tpu.memory_space<vmem>>, vector<1x128xf32>
    %c12_i32_9 = arith.constant 12 : i32
    %17 = arith.addi %c12_i32_9, %13 : i32
    %18 = arith.index_cast %17 : i32 to index
    %c0_10 = arith.constant 0 : index
    %19 = vector.load %arg3[%18, %c0_10] : memref<224x128xf32, #tpu.memory_space<vmem>>, vector<1x128xf32>
    %20 = arith.addf %16, %19 : vector<1x128xf32>
    %c2 = arith.constant 2 : index
    %21 = memref.load %arg1[%c2] : memref<16xi32, #tpu.memory_space<smem>>
    %c2_11 = arith.constant 2 : index
    %22 = memref.load %arg2[%c2_11] : memref<16xi32, #tpu.memory_space<smem>>
    %c0_i32_12 = arith.constant 0 : i32
    %23 = arith.addi %c0_i32_12, %21 : i32
    %24 = arith.index_cast %23 : i32 to index
    %c0_13 = arith.constant 0 : index
    %25 = vector.load %arg3[%24, %c0_13] : memref<224x128xf32, #tpu.memory_space<vmem>>, vector<1x128xf32>
    %c12_i32_14 = arith.constant 12 : i32
    %26 = arith.addi %c12_i32_14, %22 : i32
    %27 = arith.index_cast %26 : i32 to index
    %c0_15 = arith.constant 0 : index
    %28 = vector.load %arg3[%27, %c0_15] : memref<224x128xf32, #tpu.memory_space<vmem>>, vector<1x128xf32>
    %29 = arith.addf %25, %28 : vector<1x128xf32>
    %c3 = arith.constant 3 : index
    %30 = memref.load %arg1[%c3] : memref<16xi32, #tpu.memory_space<smem>>
    %c3_16 = arith.constant 3 : index
    %31 = memref.load %arg2[%c3_16] : memref<16xi32, #tpu.memory_space<smem>>
    %c0_i32_17 = arith.constant 0 : i32
    %32 = arith.addi %c0_i32_17, %30 : i32
    %33 = arith.index_cast %32 : i32 to index
    %c0_18 = arith.constant 0 : index
    %34 = vector.load %arg3[%33, %c0_18] : memref<224x128xf32, #tpu.memory_space<vmem>>, vector<1x128xf32>
    %c12_i32_19 = arith.constant 12 : i32
    %35 = arith.addi %c12_i32_19, %31 : i32
    %36 = arith.index_cast %35 : i32 to index
    %c0_20 = arith.constant 0 : index
    %37 = vector.load %arg3[%36, %c0_20] : memref<224x128xf32, #tpu.memory_space<vmem>>, vector<1x128xf32>
    %38 = arith.addf %34, %37 : vector<1x128xf32>
    %c4 = arith.constant 4 : index
    %39 = memref.load %arg1[%c4] : memref<16xi32, #tpu.memory_space<smem>>
    %c4_21 = arith.constant 4 : index
    %40 = memref.load %arg2[%c4_21] : memref<16xi32, #tpu.memory_space<smem>>
    %c0_i32_22 = arith.constant 0 : i32
    %41 = arith.addi %c0_i32_22, %39 : i32
    %42 = arith.index_cast %41 : i32 to index
    %c0_23 = arith.constant 0 : index
    %43 = vector.load %arg3[%42, %c0_23] : memref<224x128xf32, #tpu.memory_space<vmem>>, vector<1x128xf32>
    %c12_i32_24 = arith.constant 12 : i32
    %44 = arith.addi %c12_i32_24, %40 : i32
    %45 = arith.index_cast %44 : i32 to index
    %c0_25 = arith.constant 0 : index
    %46 = vector.load %arg3[%45, %c0_25] : memref<224x128xf32, #tpu.memory_space<vmem>>, vector<1x128xf32>
    %47 = arith.addf %43, %46 : vector<1x128xf32>
    %c5 = arith.constant 5 : index
    %48 = memref.load %arg1[%c5] : memref<16xi32, #tpu.memory_space<smem>>
    %c5_26 = arith.constant 5 : index
    %49 = memref.load %arg2[%c5_26] : memref<16xi32, #tpu.memory_space<smem>>
    %c0_i32_27 = arith.constant 0 : i32
    %50 = arith.addi %c0_i32_27, %48 : i32
    %51 = arith.index_cast %50 : i32 to index
    %c0_28 = arith.constant 0 : index
    %52 = vector.load %arg3[%51, %c0_28] : memref<224x128xf32, #tpu.memory_space<vmem>>, vector<1x128xf32>
    %c12_i32_29 = arith.constant 12 : i32
    %53 = arith.addi %c12_i32_29, %49 : i32
    %54 = arith.index_cast %53 : i32 to index
    %c0_30 = arith.constant 0 : index
    %55 = vector.load %arg3[%54, %c0_30] : memref<224x128xf32, #tpu.memory_space<vmem>>, vector<1x128xf32>
    %56 = arith.addf %52, %55 : vector<1x128xf32>
    %c6 = arith.constant 6 : index
    %57 = memref.load %arg1[%c6] : memref<16xi32, #tpu.memory_space<smem>>
    %c6_31 = arith.constant 6 : index
    %58 = memref.load %arg2[%c6_31] : memref<16xi32, #tpu.memory_space<smem>>
    %c0_i32_32 = arith.constant 0 : i32
    %59 = arith.addi %c0_i32_32, %57 : i32
    %60 = arith.index_cast %59 : i32 to index
    %c0_33 = arith.constant 0 : index
    %61 = vector.load %arg3[%60, %c0_33] : memref<224x128xf32, #tpu.memory_space<vmem>>, vector<1x128xf32>
    %c12_i32_34 = arith.constant 12 : i32
    %62 = arith.addi %c12_i32_34, %58 : i32
    %63 = arith.index_cast %62 : i32 to index
    %c0_35 = arith.constant 0 : index
    %64 = vector.load %arg3[%63, %c0_35] : memref<224x128xf32, #tpu.memory_space<vmem>>, vector<1x128xf32>
    %65 = arith.addf %61, %64 : vector<1x128xf32>
    %c7 = arith.constant 7 : index
    %66 = memref.load %arg1[%c7] : memref<16xi32, #tpu.memory_space<smem>>
    %c7_36 = arith.constant 7 : index
    %67 = memref.load %arg2[%c7_36] : memref<16xi32, #tpu.memory_space<smem>>
    %c0_i32_37 = arith.constant 0 : i32
    %68 = arith.addi %c0_i32_37, %66 : i32
    %69 = arith.index_cast %68 : i32 to index
    %c0_38 = arith.constant 0 : index
    %70 = vector.load %arg3[%69, %c0_38] : memref<224x128xf32, #tpu.memory_space<vmem>>, vector<1x128xf32>
    %c12_i32_39 = arith.constant 12 : i32
    %71 = arith.addi %c12_i32_39, %67 : i32
    %72 = arith.index_cast %71 : i32 to index
    %c0_40 = arith.constant 0 : index
    %73 = vector.load %arg3[%72, %c0_40] : memref<224x128xf32, #tpu.memory_space<vmem>>, vector<1x128xf32>
    %74 = arith.addf %70, %73 : vector<1x128xf32>
    %c8 = arith.constant 8 : index
    %75 = memref.load %arg1[%c8] : memref<16xi32, #tpu.memory_space<smem>>
    %c8_41 = arith.constant 8 : index
    %76 = memref.load %arg2[%c8_41] : memref<16xi32, #tpu.memory_space<smem>>
    %c0_i32_42 = arith.constant 0 : i32
    %77 = arith.addi %c0_i32_42, %75 : i32
    %78 = arith.index_cast %77 : i32 to index
    %c0_43 = arith.constant 0 : index
    %79 = vector.load %arg3[%78, %c0_43] : memref<224x128xf32, #tpu.memory_space<vmem>>, vector<1x128xf32>
    %c12_i32_44 = arith.constant 12 : i32
    %80 = arith.addi %c12_i32_44, %76 : i32
    %81 = arith.index_cast %80 : i32 to index
    %c0_45 = arith.constant 0 : index
    %82 = vector.load %arg3[%81, %c0_45] : memref<224x128xf32, #tpu.memory_space<vmem>>, vector<1x128xf32>
    %83 = arith.addf %79, %82 : vector<1x128xf32>
    %c9 = arith.constant 9 : index
    %84 = memref.load %arg1[%c9] : memref<16xi32, #tpu.memory_space<smem>>
    %c9_46 = arith.constant 9 : index
    %85 = memref.load %arg2[%c9_46] : memref<16xi32, #tpu.memory_space<smem>>
    %c0_i32_47 = arith.constant 0 : i32
    %86 = arith.addi %c0_i32_47, %84 : i32
    %87 = arith.index_cast %86 : i32 to index
    %c0_48 = arith.constant 0 : index
    %88 = vector.load %arg3[%87, %c0_48] : memref<224x128xf32, #tpu.memory_space<vmem>>, vector<1x128xf32>
    %c12_i32_49 = arith.constant 12 : i32
    %89 = arith.addi %c12_i32_49, %85 : i32
    %90 = arith.index_cast %89 : i32 to index
    %c0_50 = arith.constant 0 : index
    %91 = vector.load %arg3[%90, %c0_50] : memref<224x128xf32, #tpu.memory_space<vmem>>, vector<1x128xf32>
    %92 = arith.addf %88, %91 : vector<1x128xf32>
    %c10 = arith.constant 10 : index
    %93 = memref.load %arg1[%c10] : memref<16xi32, #tpu.memory_space<smem>>
    %c10_51 = arith.constant 10 : index
    %94 = memref.load %arg2[%c10_51] : memref<16xi32, #tpu.memory_space<smem>>
    %c0_i32_52 = arith.constant 0 : i32
    %95 = arith.addi %c0_i32_52, %93 : i32
    %96 = arith.index_cast %95 : i32 to index
    %c0_53 = arith.constant 0 : index
    %97 = vector.load %arg3[%96, %c0_53] : memref<224x128xf32, #tpu.memory_space<vmem>>, vector<1x128xf32>
    %c12_i32_54 = arith.constant 12 : i32
    %98 = arith.addi %c12_i32_54, %94 : i32
    %99 = arith.index_cast %98 : i32 to index
    %c0_55 = arith.constant 0 : index
    %100 = vector.load %arg3[%99, %c0_55] : memref<224x128xf32, #tpu.memory_space<vmem>>, vector<1x128xf32>
    %101 = arith.addf %97, %100 : vector<1x128xf32>
    %c11 = arith.constant 11 : index
    %102 = memref.load %arg1[%c11] : memref<16xi32, #tpu.memory_space<smem>>
    %c11_56 = arith.constant 11 : index
    %103 = memref.load %arg2[%c11_56] : memref<16xi32, #tpu.memory_space<smem>>
    %c0_i32_57 = arith.constant 0 : i32
    %104 = arith.addi %c0_i32_57, %102 : i32
    %105 = arith.index_cast %104 : i32 to index
    %c0_58 = arith.constant 0 : index
    %106 = vector.load %arg3[%105, %c0_58] : memref<224x128xf32, #tpu.memory_space<vmem>>, vector<1x128xf32>
    %c12_i32_59 = arith.constant 12 : i32
    %107 = arith.addi %c12_i32_59, %103 : i32
    %108 = arith.index_cast %107 : i32 to index
    %c0_60 = arith.constant 0 : index
    %109 = vector.load %arg3[%108, %c0_60] : memref<224x128xf32, #tpu.memory_space<vmem>>, vector<1x128xf32>
    %110 = arith.addf %106, %109 : vector<1x128xf32>
    %c12 = arith.constant 12 : index
    %111 = memref.load %arg1[%c12] : memref<16xi32, #tpu.memory_space<smem>>
    %c12_61 = arith.constant 12 : index
    %112 = memref.load %arg2[%c12_61] : memref<16xi32, #tpu.memory_space<smem>>
    %c0_i32_62 = arith.constant 0 : i32
    %113 = arith.addi %c0_i32_62, %111 : i32
    %114 = arith.index_cast %113 : i32 to index
    %c0_63 = arith.constant 0 : index
    %115 = vector.load %arg3[%114, %c0_63] : memref<224x128xf32, #tpu.memory_space<vmem>>, vector<1x128xf32>
    %c12_i32_64 = arith.constant 12 : i32
    %116 = arith.addi %c12_i32_64, %112 : i32
    %117 = arith.index_cast %116 : i32 to index
    %c0_65 = arith.constant 0 : index
    %118 = vector.load %arg3[%117, %c0_65] : memref<224x128xf32, #tpu.memory_space<vmem>>, vector<1x128xf32>
    %119 = arith.addf %115, %118 : vector<1x128xf32>
    %c13 = arith.constant 13 : index
    %120 = memref.load %arg1[%c13] : memref<16xi32, #tpu.memory_space<smem>>
    %c13_66 = arith.constant 13 : index
    %121 = memref.load %arg2[%c13_66] : memref<16xi32, #tpu.memory_space<smem>>
    %c0_i32_67 = arith.constant 0 : i32
    %122 = arith.addi %c0_i32_67, %120 : i32
    %123 = arith.index_cast %122 : i32 to index
    %c0_68 = arith.constant 0 : index
    %124 = vector.load %arg3[%123, %c0_68] : memref<224x128xf32, #tpu.memory_space<vmem>>, vector<1x128xf32>
    %c12_i32_69 = arith.constant 12 : i32
    %125 = arith.addi %c12_i32_69, %121 : i32
    %126 = arith.index_cast %125 : i32 to index
    %c0_70 = arith.constant 0 : index
    %127 = vector.load %arg3[%126, %c0_70] : memref<224x128xf32, #tpu.memory_space<vmem>>, vector<1x128xf32>
    %128 = arith.addf %124, %127 : vector<1x128xf32>
    %c14 = arith.constant 14 : index
    %129 = memref.load %arg1[%c14] : memref<16xi32, #tpu.memory_space<smem>>
    %c14_71 = arith.constant 14 : index
    %130 = memref.load %arg2[%c14_71] : memref<16xi32, #tpu.memory_space<smem>>
    %c0_i32_72 = arith.constant 0 : i32
    %131 = arith.addi %c0_i32_72, %129 : i32
    %132 = arith.index_cast %131 : i32 to index
    %c0_73 = arith.constant 0 : index
    %133 = vector.load %arg3[%132, %c0_73] : memref<224x128xf32, #tpu.memory_space<vmem>>, vector<1x128xf32>
    %c12_i32_74 = arith.constant 12 : i32
    %134 = arith.addi %c12_i32_74, %130 : i32
    %135 = arith.index_cast %134 : i32 to index
    %c0_75 = arith.constant 0 : index
    %136 = vector.load %arg3[%135, %c0_75] : memref<224x128xf32, #tpu.memory_space<vmem>>, vector<1x128xf32>
    %137 = arith.addf %133, %136 : vector<1x128xf32>
    %c15 = arith.constant 15 : index
    %138 = memref.load %arg1[%c15] : memref<16xi32, #tpu.memory_space<smem>>
    %c15_76 = arith.constant 15 : index
    %139 = memref.load %arg2[%c15_76] : memref<16xi32, #tpu.memory_space<smem>>
    %c0_i32_77 = arith.constant 0 : i32
    %140 = arith.addi %c0_i32_77, %138 : i32
    %141 = arith.index_cast %140 : i32 to index
    %c0_78 = arith.constant 0 : index
    %142 = vector.load %arg3[%141, %c0_78] : memref<224x128xf32, #tpu.memory_space<vmem>>, vector<1x128xf32>
    %c12_i32_79 = arith.constant 12 : i32
    %143 = arith.addi %c12_i32_79, %139 : i32
    %144 = arith.index_cast %143 : i32 to index
    %c0_80 = arith.constant 0 : index
    %145 = vector.load %arg3[%144, %c0_80] : memref<224x128xf32, #tpu.memory_space<vmem>>, vector<1x128xf32>
    %146 = arith.addf %142, %145 : vector<1x128xf32>
    %c0_81 = arith.constant 0 : index
    %c0_82 = arith.constant 0 : index
    %147 = vector.load %arg4[%c0_81, %c0_82] : memref<2x32xf32, #tpu.memory_space<vmem>>, vector<1x32xf32>
    %c1_83 = arith.constant 1 : index
    %c0_84 = arith.constant 0 : index
    %148 = vector.load %arg4[%c1_83, %c0_84] : memref<2x32xf32, #tpu.memory_space<vmem>>, vector<1x32xf32>
    %cst = arith.constant dense<0.000000e+00> : vector<1x128xf32>
    %149 = tpu.matmul %147, %0, %cst {dimension_numbers = #tpu.dot_dimension_numbers<[1], [0], [0], [1], [0, 0, 1, 1], [], []>} : vector<1x32xf32>, vector<32x128xf32>, vector<1x128xf32> -> vector<1x128xf32>
    %150 = arith.addf %11, %149 : vector<1x128xf32>
    %151 = arith.mulf %150, %1 : vector<1x128xf32>
    %152 = math.tanh %151 : vector<1x128xf32>
    %153 = arith.mulf %152, %1 : vector<1x128xf32>
    %154 = arith.addf %153, %2 : vector<1x128xf32>
    %155 = vector.extract_strided_slice %154 {offsets = [0, 32], sizes = [1, 32], strides = [1, 1]} : vector<1x128xf32> to vector<1x32xf32>
    %156 = arith.mulf %155, %148 : vector<1x32xf32>
    %157 = vector.extract_strided_slice %154 {offsets = [0, 0], sizes = [1, 32], strides = [1, 1]} : vector<1x128xf32> to vector<1x32xf32>
    %158 = vector.extract_strided_slice %154 {offsets = [0, 64], sizes = [1, 32], strides = [1, 1]} : vector<1x128xf32> to vector<1x32xf32>
    %159 = arith.mulf %157, %158 : vector<1x32xf32>
    %160 = arith.addf %156, %159 : vector<1x32xf32>
    %161 = vector.extract_strided_slice %154 {offsets = [0, 96], sizes = [1, 32], strides = [1, 1]} : vector<1x128xf32> to vector<1x32xf32>
    %162 = math.tanh %160 : vector<1x32xf32>
    %163 = arith.mulf %161, %162 : vector<1x32xf32>
    %cst_85 = arith.constant dense<0.000000e+00> : vector<1x128xf32>
    %164 = tpu.matmul %163, %0, %cst_85 {dimension_numbers = #tpu.dot_dimension_numbers<[1], [0], [0], [1], [0, 0, 1, 1], [], []>} : vector<1x32xf32>, vector<32x128xf32>, vector<1x128xf32> -> vector<1x128xf32>
    %165 = arith.addf %20, %164 : vector<1x128xf32>
    %166 = arith.mulf %165, %1 : vector<1x128xf32>
    %167 = math.tanh %166 : vector<1x128xf32>
    %168 = arith.mulf %167, %1 : vector<1x128xf32>
    %169 = arith.addf %168, %2 : vector<1x128xf32>
    %170 = vector.extract_strided_slice %169 {offsets = [0, 32], sizes = [1, 32], strides = [1, 1]} : vector<1x128xf32> to vector<1x32xf32>
    %171 = arith.mulf %170, %160 : vector<1x32xf32>
    %172 = vector.extract_strided_slice %169 {offsets = [0, 0], sizes = [1, 32], strides = [1, 1]} : vector<1x128xf32> to vector<1x32xf32>
    %173 = vector.extract_strided_slice %169 {offsets = [0, 64], sizes = [1, 32], strides = [1, 1]} : vector<1x128xf32> to vector<1x32xf32>
    %174 = arith.mulf %172, %173 : vector<1x32xf32>
    %175 = arith.addf %171, %174 : vector<1x32xf32>
    %176 = vector.extract_strided_slice %169 {offsets = [0, 96], sizes = [1, 32], strides = [1, 1]} : vector<1x128xf32> to vector<1x32xf32>
    %177 = math.tanh %175 : vector<1x32xf32>
    %178 = arith.mulf %176, %177 : vector<1x32xf32>
    %cst_86 = arith.constant dense<0.000000e+00> : vector<1x128xf32>
    %179 = tpu.matmul %178, %0, %cst_86 {dimension_numbers = #tpu.dot_dimension_numbers<[1], [0], [0], [1], [0, 0, 1, 1], [], []>} : vector<1x32xf32>, vector<32x128xf32>, vector<1x128xf32> -> vector<1x128xf32>
    %180 = arith.addf %29, %179 : vector<1x128xf32>
    %181 = arith.mulf %180, %1 : vector<1x128xf32>
    %182 = math.tanh %181 : vector<1x128xf32>
    %183 = arith.mulf %182, %1 : vector<1x128xf32>
    %184 = arith.addf %183, %2 : vector<1x128xf32>
    %185 = vector.extract_strided_slice %184 {offsets = [0, 32], sizes = [1, 32], strides = [1, 1]} : vector<1x128xf32> to vector<1x32xf32>
    %186 = arith.mulf %185, %175 : vector<1x32xf32>
    %187 = vector.extract_strided_slice %184 {offsets = [0, 0], sizes = [1, 32], strides = [1, 1]} : vector<1x128xf32> to vector<1x32xf32>
    %188 = vector.extract_strided_slice %184 {offsets = [0, 64], sizes = [1, 32], strides = [1, 1]} : vector<1x128xf32> to vector<1x32xf32>
    %189 = arith.mulf %187, %188 : vector<1x32xf32>
    %190 = arith.addf %186, %189 : vector<1x32xf32>
    %191 = vector.extract_strided_slice %184 {offsets = [0, 96], sizes = [1, 32], strides = [1, 1]} : vector<1x128xf32> to vector<1x32xf32>
    %192 = math.tanh %190 : vector<1x32xf32>
    %193 = arith.mulf %191, %192 : vector<1x32xf32>
    %cst_87 = arith.constant dense<0.000000e+00> : vector<1x128xf32>
    %194 = tpu.matmul %193, %0, %cst_87 {dimension_numbers = #tpu.dot_dimension_numbers<[1], [0], [0], [1], [0, 0, 1, 1], [], []>} : vector<1x32xf32>, vector<32x128xf32>, vector<1x128xf32> -> vector<1x128xf32>
    %195 = arith.addf %38, %194 : vector<1x128xf32>
    %196 = arith.mulf %195, %1 : vector<1x128xf32>
    %197 = math.tanh %196 : vector<1x128xf32>
    %198 = arith.mulf %197, %1 : vector<1x128xf32>
    %199 = arith.addf %198, %2 : vector<1x128xf32>
    %200 = vector.extract_strided_slice %199 {offsets = [0, 32], sizes = [1, 32], strides = [1, 1]} : vector<1x128xf32> to vector<1x32xf32>
    %201 = arith.mulf %200, %190 : vector<1x32xf32>
    %202 = vector.extract_strided_slice %199 {offsets = [0, 0], sizes = [1, 32], strides = [1, 1]} : vector<1x128xf32> to vector<1x32xf32>
    %203 = vector.extract_strided_slice %199 {offsets = [0, 64], sizes = [1, 32], strides = [1, 1]} : vector<1x128xf32> to vector<1x32xf32>
    %204 = arith.mulf %202, %203 : vector<1x32xf32>
    %205 = arith.addf %201, %204 : vector<1x32xf32>
    %206 = vector.extract_strided_slice %199 {offsets = [0, 96], sizes = [1, 32], strides = [1, 1]} : vector<1x128xf32> to vector<1x32xf32>
    %207 = math.tanh %205 : vector<1x32xf32>
    %208 = arith.mulf %206, %207 : vector<1x32xf32>
    %cst_88 = arith.constant dense<0.000000e+00> : vector<1x128xf32>
    %209 = tpu.matmul %208, %0, %cst_88 {dimension_numbers = #tpu.dot_dimension_numbers<[1], [0], [0], [1], [0, 0, 1, 1], [], []>} : vector<1x32xf32>, vector<32x128xf32>, vector<1x128xf32> -> vector<1x128xf32>
    %210 = arith.addf %47, %209 : vector<1x128xf32>
    %211 = arith.mulf %210, %1 : vector<1x128xf32>
    %212 = math.tanh %211 : vector<1x128xf32>
    %213 = arith.mulf %212, %1 : vector<1x128xf32>
    %214 = arith.addf %213, %2 : vector<1x128xf32>
    %215 = vector.extract_strided_slice %214 {offsets = [0, 32], sizes = [1, 32], strides = [1, 1]} : vector<1x128xf32> to vector<1x32xf32>
    %216 = arith.mulf %215, %205 : vector<1x32xf32>
    %217 = vector.extract_strided_slice %214 {offsets = [0, 0], sizes = [1, 32], strides = [1, 1]} : vector<1x128xf32> to vector<1x32xf32>
    %218 = vector.extract_strided_slice %214 {offsets = [0, 64], sizes = [1, 32], strides = [1, 1]} : vector<1x128xf32> to vector<1x32xf32>
    %219 = arith.mulf %217, %218 : vector<1x32xf32>
    %220 = arith.addf %216, %219 : vector<1x32xf32>
    %221 = vector.extract_strided_slice %214 {offsets = [0, 96], sizes = [1, 32], strides = [1, 1]} : vector<1x128xf32> to vector<1x32xf32>
    %222 = math.tanh %220 : vector<1x32xf32>
    %223 = arith.mulf %221, %222 : vector<1x32xf32>
    %cst_89 = arith.constant dense<0.000000e+00> : vector<1x128xf32>
    %224 = tpu.matmul %223, %0, %cst_89 {dimension_numbers = #tpu.dot_dimension_numbers<[1], [0], [0], [1], [0, 0, 1, 1], [], []>} : vector<1x32xf32>, vector<32x128xf32>, vector<1x128xf32> -> vector<1x128xf32>
    %225 = arith.addf %56, %224 : vector<1x128xf32>
    %226 = arith.mulf %225, %1 : vector<1x128xf32>
    %227 = math.tanh %226 : vector<1x128xf32>
    %228 = arith.mulf %227, %1 : vector<1x128xf32>
    %229 = arith.addf %228, %2 : vector<1x128xf32>
    %230 = vector.extract_strided_slice %229 {offsets = [0, 32], sizes = [1, 32], strides = [1, 1]} : vector<1x128xf32> to vector<1x32xf32>
    %231 = arith.mulf %230, %220 : vector<1x32xf32>
    %232 = vector.extract_strided_slice %229 {offsets = [0, 0], sizes = [1, 32], strides = [1, 1]} : vector<1x128xf32> to vector<1x32xf32>
    %233 = vector.extract_strided_slice %229 {offsets = [0, 64], sizes = [1, 32], strides = [1, 1]} : vector<1x128xf32> to vector<1x32xf32>
    %234 = arith.mulf %232, %233 : vector<1x32xf32>
    %235 = arith.addf %231, %234 : vector<1x32xf32>
    %236 = vector.extract_strided_slice %229 {offsets = [0, 96], sizes = [1, 32], strides = [1, 1]} : vector<1x128xf32> to vector<1x32xf32>
    %237 = math.tanh %235 : vector<1x32xf32>
    %238 = arith.mulf %236, %237 : vector<1x32xf32>
    %cst_90 = arith.constant dense<0.000000e+00> : vector<1x128xf32>
    %239 = tpu.matmul %238, %0, %cst_90 {dimension_numbers = #tpu.dot_dimension_numbers<[1], [0], [0], [1], [0, 0, 1, 1], [], []>} : vector<1x32xf32>, vector<32x128xf32>, vector<1x128xf32> -> vector<1x128xf32>
    %240 = arith.addf %65, %239 : vector<1x128xf32>
    %241 = arith.mulf %240, %1 : vector<1x128xf32>
    %242 = math.tanh %241 : vector<1x128xf32>
    %243 = arith.mulf %242, %1 : vector<1x128xf32>
    %244 = arith.addf %243, %2 : vector<1x128xf32>
    %245 = vector.extract_strided_slice %244 {offsets = [0, 32], sizes = [1, 32], strides = [1, 1]} : vector<1x128xf32> to vector<1x32xf32>
    %246 = arith.mulf %245, %235 : vector<1x32xf32>
    %247 = vector.extract_strided_slice %244 {offsets = [0, 0], sizes = [1, 32], strides = [1, 1]} : vector<1x128xf32> to vector<1x32xf32>
    %248 = vector.extract_strided_slice %244 {offsets = [0, 64], sizes = [1, 32], strides = [1, 1]} : vector<1x128xf32> to vector<1x32xf32>
    %249 = arith.mulf %247, %248 : vector<1x32xf32>
    %250 = arith.addf %246, %249 : vector<1x32xf32>
    %251 = vector.extract_strided_slice %244 {offsets = [0, 96], sizes = [1, 32], strides = [1, 1]} : vector<1x128xf32> to vector<1x32xf32>
    %252 = math.tanh %250 : vector<1x32xf32>
    %253 = arith.mulf %251, %252 : vector<1x32xf32>
    %cst_91 = arith.constant dense<0.000000e+00> : vector<1x128xf32>
    %254 = tpu.matmul %253, %0, %cst_91 {dimension_numbers = #tpu.dot_dimension_numbers<[1], [0], [0], [1], [0, 0, 1, 1], [], []>} : vector<1x32xf32>, vector<32x128xf32>, vector<1x128xf32> -> vector<1x128xf32>
    %255 = arith.addf %74, %254 : vector<1x128xf32>
    %256 = arith.mulf %255, %1 : vector<1x128xf32>
    %257 = math.tanh %256 : vector<1x128xf32>
    %258 = arith.mulf %257, %1 : vector<1x128xf32>
    %259 = arith.addf %258, %2 : vector<1x128xf32>
    %260 = vector.extract_strided_slice %259 {offsets = [0, 32], sizes = [1, 32], strides = [1, 1]} : vector<1x128xf32> to vector<1x32xf32>
    %261 = arith.mulf %260, %250 : vector<1x32xf32>
    %262 = vector.extract_strided_slice %259 {offsets = [0, 0], sizes = [1, 32], strides = [1, 1]} : vector<1x128xf32> to vector<1x32xf32>
    %263 = vector.extract_strided_slice %259 {offsets = [0, 64], sizes = [1, 32], strides = [1, 1]} : vector<1x128xf32> to vector<1x32xf32>
    %264 = arith.mulf %262, %263 : vector<1x32xf32>
    %265 = arith.addf %261, %264 : vector<1x32xf32>
    %266 = vector.extract_strided_slice %259 {offsets = [0, 96], sizes = [1, 32], strides = [1, 1]} : vector<1x128xf32> to vector<1x32xf32>
    %267 = math.tanh %265 : vector<1x32xf32>
    %268 = arith.mulf %266, %267 : vector<1x32xf32>
    %cst_92 = arith.constant dense<0.000000e+00> : vector<1x128xf32>
    %269 = tpu.matmul %268, %0, %cst_92 {dimension_numbers = #tpu.dot_dimension_numbers<[1], [0], [0], [1], [0, 0, 1, 1], [], []>} : vector<1x32xf32>, vector<32x128xf32>, vector<1x128xf32> -> vector<1x128xf32>
    %270 = arith.addf %83, %269 : vector<1x128xf32>
    %271 = arith.mulf %270, %1 : vector<1x128xf32>
    %272 = math.tanh %271 : vector<1x128xf32>
    %273 = arith.mulf %272, %1 : vector<1x128xf32>
    %274 = arith.addf %273, %2 : vector<1x128xf32>
    %275 = vector.extract_strided_slice %274 {offsets = [0, 32], sizes = [1, 32], strides = [1, 1]} : vector<1x128xf32> to vector<1x32xf32>
    %276 = arith.mulf %275, %265 : vector<1x32xf32>
    %277 = vector.extract_strided_slice %274 {offsets = [0, 0], sizes = [1, 32], strides = [1, 1]} : vector<1x128xf32> to vector<1x32xf32>
    %278 = vector.extract_strided_slice %274 {offsets = [0, 64], sizes = [1, 32], strides = [1, 1]} : vector<1x128xf32> to vector<1x32xf32>
    %279 = arith.mulf %277, %278 : vector<1x32xf32>
    %280 = arith.addf %276, %279 : vector<1x32xf32>
    %281 = vector.extract_strided_slice %274 {offsets = [0, 96], sizes = [1, 32], strides = [1, 1]} : vector<1x128xf32> to vector<1x32xf32>
    %282 = math.tanh %280 : vector<1x32xf32>
    %283 = arith.mulf %281, %282 : vector<1x32xf32>
    %cst_93 = arith.constant dense<0.000000e+00> : vector<1x128xf32>
    %284 = tpu.matmul %283, %0, %cst_93 {dimension_numbers = #tpu.dot_dimension_numbers<[1], [0], [0], [1], [0, 0, 1, 1], [], []>} : vector<1x32xf32>, vector<32x128xf32>, vector<1x128xf32> -> vector<1x128xf32>
    %285 = arith.addf %92, %284 : vector<1x128xf32>
    %286 = arith.mulf %285, %1 : vector<1x128xf32>
    %287 = math.tanh %286 : vector<1x128xf32>
    %288 = arith.mulf %287, %1 : vector<1x128xf32>
    %289 = arith.addf %288, %2 : vector<1x128xf32>
    %290 = vector.extract_strided_slice %289 {offsets = [0, 32], sizes = [1, 32], strides = [1, 1]} : vector<1x128xf32> to vector<1x32xf32>
    %291 = arith.mulf %290, %280 : vector<1x32xf32>
    %292 = vector.extract_strided_slice %289 {offsets = [0, 0], sizes = [1, 32], strides = [1, 1]} : vector<1x128xf32> to vector<1x32xf32>
    %293 = vector.extract_strided_slice %289 {offsets = [0, 64], sizes = [1, 32], strides = [1, 1]} : vector<1x128xf32> to vector<1x32xf32>
    %294 = arith.mulf %292, %293 : vector<1x32xf32>
    %295 = arith.addf %291, %294 : vector<1x32xf32>
    %296 = vector.extract_strided_slice %289 {offsets = [0, 96], sizes = [1, 32], strides = [1, 1]} : vector<1x128xf32> to vector<1x32xf32>
    %297 = math.tanh %295 : vector<1x32xf32>
    %298 = arith.mulf %296, %297 : vector<1x32xf32>
    %cst_94 = arith.constant dense<0.000000e+00> : vector<1x128xf32>
    %299 = tpu.matmul %298, %0, %cst_94 {dimension_numbers = #tpu.dot_dimension_numbers<[1], [0], [0], [1], [0, 0, 1, 1], [], []>} : vector<1x32xf32>, vector<32x128xf32>, vector<1x128xf32> -> vector<1x128xf32>
    %300 = arith.addf %101, %299 : vector<1x128xf32>
    %301 = arith.mulf %300, %1 : vector<1x128xf32>
    %302 = math.tanh %301 : vector<1x128xf32>
    %303 = arith.mulf %302, %1 : vector<1x128xf32>
    %304 = arith.addf %303, %2 : vector<1x128xf32>
    %305 = vector.extract_strided_slice %304 {offsets = [0, 32], sizes = [1, 32], strides = [1, 1]} : vector<1x128xf32> to vector<1x32xf32>
    %306 = arith.mulf %305, %295 : vector<1x32xf32>
    %307 = vector.extract_strided_slice %304 {offsets = [0, 0], sizes = [1, 32], strides = [1, 1]} : vector<1x128xf32> to vector<1x32xf32>
    %308 = vector.extract_strided_slice %304 {offsets = [0, 64], sizes = [1, 32], strides = [1, 1]} : vector<1x128xf32> to vector<1x32xf32>
    %309 = arith.mulf %307, %308 : vector<1x32xf32>
    %310 = arith.addf %306, %309 : vector<1x32xf32>
    %311 = vector.extract_strided_slice %304 {offsets = [0, 96], sizes = [1, 32], strides = [1, 1]} : vector<1x128xf32> to vector<1x32xf32>
    %312 = math.tanh %310 : vector<1x32xf32>
    %313 = arith.mulf %311, %312 : vector<1x32xf32>
    %cst_95 = arith.constant dense<0.000000e+00> : vector<1x128xf32>
    %314 = tpu.matmul %313, %0, %cst_95 {dimension_numbers = #tpu.dot_dimension_numbers<[1], [0], [0], [1], [0, 0, 1, 1], [], []>} : vector<1x32xf32>, vector<32x128xf32>, vector<1x128xf32> -> vector<1x128xf32>
    %315 = arith.addf %110, %314 : vector<1x128xf32>
    %316 = arith.mulf %315, %1 : vector<1x128xf32>
    %317 = math.tanh %316 : vector<1x128xf32>
    %318 = arith.mulf %317, %1 : vector<1x128xf32>
    %319 = arith.addf %318, %2 : vector<1x128xf32>
    %320 = vector.extract_strided_slice %319 {offsets = [0, 32], sizes = [1, 32], strides = [1, 1]} : vector<1x128xf32> to vector<1x32xf32>
    %321 = arith.mulf %320, %310 : vector<1x32xf32>
    %322 = vector.extract_strided_slice %319 {offsets = [0, 0], sizes = [1, 32], strides = [1, 1]} : vector<1x128xf32> to vector<1x32xf32>
    %323 = vector.extract_strided_slice %319 {offsets = [0, 64], sizes = [1, 32], strides = [1, 1]} : vector<1x128xf32> to vector<1x32xf32>
    %324 = arith.mulf %322, %323 : vector<1x32xf32>
    %325 = arith.addf %321, %324 : vector<1x32xf32>
    %326 = vector.extract_strided_slice %319 {offsets = [0, 96], sizes = [1, 32], strides = [1, 1]} : vector<1x128xf32> to vector<1x32xf32>
    %327 = math.tanh %325 : vector<1x32xf32>
    %328 = arith.mulf %326, %327 : vector<1x32xf32>
    %cst_96 = arith.constant dense<0.000000e+00> : vector<1x128xf32>
    %329 = tpu.matmul %328, %0, %cst_96 {dimension_numbers = #tpu.dot_dimension_numbers<[1], [0], [0], [1], [0, 0, 1, 1], [], []>} : vector<1x32xf32>, vector<32x128xf32>, vector<1x128xf32> -> vector<1x128xf32>
    %330 = arith.addf %119, %329 : vector<1x128xf32>
    %331 = arith.mulf %330, %1 : vector<1x128xf32>
    %332 = math.tanh %331 : vector<1x128xf32>
    %333 = arith.mulf %332, %1 : vector<1x128xf32>
    %334 = arith.addf %333, %2 : vector<1x128xf32>
    %335 = vector.extract_strided_slice %334 {offsets = [0, 32], sizes = [1, 32], strides = [1, 1]} : vector<1x128xf32> to vector<1x32xf32>
    %336 = arith.mulf %335, %325 : vector<1x32xf32>
    %337 = vector.extract_strided_slice %334 {offsets = [0, 0], sizes = [1, 32], strides = [1, 1]} : vector<1x128xf32> to vector<1x32xf32>
    %338 = vector.extract_strided_slice %334 {offsets = [0, 64], sizes = [1, 32], strides = [1, 1]} : vector<1x128xf32> to vector<1x32xf32>
    %339 = arith.mulf %337, %338 : vector<1x32xf32>
    %340 = arith.addf %336, %339 : vector<1x32xf32>
    %341 = vector.extract_strided_slice %334 {offsets = [0, 96], sizes = [1, 32], strides = [1, 1]} : vector<1x128xf32> to vector<1x32xf32>
    %342 = math.tanh %340 : vector<1x32xf32>
    %343 = arith.mulf %341, %342 : vector<1x32xf32>
    %cst_97 = arith.constant dense<0.000000e+00> : vector<1x128xf32>
    %344 = tpu.matmul %343, %0, %cst_97 {dimension_numbers = #tpu.dot_dimension_numbers<[1], [0], [0], [1], [0, 0, 1, 1], [], []>} : vector<1x32xf32>, vector<32x128xf32>, vector<1x128xf32> -> vector<1x128xf32>
    %345 = arith.addf %128, %344 : vector<1x128xf32>
    %346 = arith.mulf %345, %1 : vector<1x128xf32>
    %347 = math.tanh %346 : vector<1x128xf32>
    %348 = arith.mulf %347, %1 : vector<1x128xf32>
    %349 = arith.addf %348, %2 : vector<1x128xf32>
    %350 = vector.extract_strided_slice %349 {offsets = [0, 32], sizes = [1, 32], strides = [1, 1]} : vector<1x128xf32> to vector<1x32xf32>
    %351 = arith.mulf %350, %340 : vector<1x32xf32>
    %352 = vector.extract_strided_slice %349 {offsets = [0, 0], sizes = [1, 32], strides = [1, 1]} : vector<1x128xf32> to vector<1x32xf32>
    %353 = vector.extract_strided_slice %349 {offsets = [0, 64], sizes = [1, 32], strides = [1, 1]} : vector<1x128xf32> to vector<1x32xf32>
    %354 = arith.mulf %352, %353 : vector<1x32xf32>
    %355 = arith.addf %351, %354 : vector<1x32xf32>
    %356 = vector.extract_strided_slice %349 {offsets = [0, 96], sizes = [1, 32], strides = [1, 1]} : vector<1x128xf32> to vector<1x32xf32>
    %357 = math.tanh %355 : vector<1x32xf32>
    %358 = arith.mulf %356, %357 : vector<1x32xf32>
    %cst_98 = arith.constant dense<0.000000e+00> : vector<1x128xf32>
    %359 = tpu.matmul %358, %0, %cst_98 {dimension_numbers = #tpu.dot_dimension_numbers<[1], [0], [0], [1], [0, 0, 1, 1], [], []>} : vector<1x32xf32>, vector<32x128xf32>, vector<1x128xf32> -> vector<1x128xf32>
    %360 = arith.addf %137, %359 : vector<1x128xf32>
    %361 = arith.mulf %360, %1 : vector<1x128xf32>
    %362 = math.tanh %361 : vector<1x128xf32>
    %363 = arith.mulf %362, %1 : vector<1x128xf32>
    %364 = arith.addf %363, %2 : vector<1x128xf32>
    %365 = vector.extract_strided_slice %364 {offsets = [0, 32], sizes = [1, 32], strides = [1, 1]} : vector<1x128xf32> to vector<1x32xf32>
    %366 = arith.mulf %365, %355 : vector<1x32xf32>
    %367 = vector.extract_strided_slice %364 {offsets = [0, 0], sizes = [1, 32], strides = [1, 1]} : vector<1x128xf32> to vector<1x32xf32>
    %368 = vector.extract_strided_slice %364 {offsets = [0, 64], sizes = [1, 32], strides = [1, 1]} : vector<1x128xf32> to vector<1x32xf32>
    %369 = arith.mulf %367, %368 : vector<1x32xf32>
    %370 = arith.addf %366, %369 : vector<1x32xf32>
    %371 = vector.extract_strided_slice %364 {offsets = [0, 96], sizes = [1, 32], strides = [1, 1]} : vector<1x128xf32> to vector<1x32xf32>
    %372 = math.tanh %370 : vector<1x32xf32>
    %373 = arith.mulf %371, %372 : vector<1x32xf32>
    %cst_99 = arith.constant dense<0.000000e+00> : vector<1x128xf32>
    %374 = tpu.matmul %373, %0, %cst_99 {dimension_numbers = #tpu.dot_dimension_numbers<[1], [0], [0], [1], [0, 0, 1, 1], [], []>} : vector<1x32xf32>, vector<32x128xf32>, vector<1x128xf32> -> vector<1x128xf32>
    %375 = arith.addf %146, %374 : vector<1x128xf32>
    %376 = arith.mulf %375, %1 : vector<1x128xf32>
    %377 = math.tanh %376 : vector<1x128xf32>
    %378 = arith.mulf %377, %1 : vector<1x128xf32>
    %379 = arith.addf %378, %2 : vector<1x128xf32>
    %380 = vector.extract_strided_slice %379 {offsets = [0, 32], sizes = [1, 32], strides = [1, 1]} : vector<1x128xf32> to vector<1x32xf32>
    %381 = arith.mulf %380, %370 : vector<1x32xf32>
    %382 = vector.extract_strided_slice %379 {offsets = [0, 0], sizes = [1, 32], strides = [1, 1]} : vector<1x128xf32> to vector<1x32xf32>
    %383 = vector.extract_strided_slice %379 {offsets = [0, 64], sizes = [1, 32], strides = [1, 1]} : vector<1x128xf32> to vector<1x32xf32>
    %384 = arith.mulf %382, %383 : vector<1x32xf32>
    %385 = arith.addf %381, %384 : vector<1x32xf32>
    %386 = vector.extract_strided_slice %379 {offsets = [0, 96], sizes = [1, 32], strides = [1, 1]} : vector<1x128xf32> to vector<1x32xf32>
    %387 = math.tanh %385 : vector<1x32xf32>
    %388 = arith.mulf %386, %387 : vector<1x32xf32>
    %389 = tpu.concatenate %283, %298, %313, %328, %343, %358, %373, %388 in 0 : vector<1x32xf32>, vector<1x32xf32>, vector<1x32xf32>, vector<1x32xf32>, vector<1x32xf32>, vector<1x32xf32>, vector<1x32xf32>, vector<1x32xf32> -> vector<8x32xf32>
    %c56 = arith.constant 56 : index
    %c0_100 = arith.constant 0 : index
    %390 = vector.load %arg3[%c56, %c0_100] : memref<224x128xf32, #tpu.memory_space<vmem>>, vector<32x32xf32>
    %c88 = arith.constant 88 : index
    %c0_101 = arith.constant 0 : index
    %391 = vector.load %arg3[%c88, %c0_101] : memref<224x128xf32, #tpu.memory_space<vmem>>, vector<32x32xf32>
    %cst_102 = arith.constant dense<0.000000e+00> : vector<1x32xf32>
    %392 = tpu.matmul %388, %391, %cst_102 {dimension_numbers = #tpu.dot_dimension_numbers<[1], [0], [0], [1], [0, 0, 1, 1], [], []>} : vector<1x32xf32>, vector<32x32xf32>, vector<1x32xf32> -> vector<1x32xf32>
    %cst_103 = arith.constant dense<0.000000e+00> : vector<8x32xf32>
    %393 = tpu.matmul %389, %390, %cst_103 {dimension_numbers = #tpu.dot_dimension_numbers<[1], [0], [0], [1], [0, 0, 1, 1], [], []>} : vector<8x32xf32>, vector<32x32xf32>, vector<8x32xf32> -> vector<8x32xf32>
    %394 = vector.broadcast %392 : vector<1x32xf32> to vector<8x32xf32>
    %395 = arith.addf %393, %394 : vector<8x32xf32>
    %396 = math.tanh %395 : vector<8x32xf32>
    %cst_104 = arith.constant 1.000000e+00 : f32
    %397 = vector.broadcast %cst_104 : f32 to vector<32x1xf32>
    %cst_105 = arith.constant dense<0.000000e+00> : vector<1x8xf32>
    %398 = tpu.matmul %397, %396, %cst_105 {dimension_numbers = #tpu.dot_dimension_numbers<[0], [1], [1], [0], [0, 1, 1, 0], [], []>} : vector<32x1xf32>, vector<8x32xf32>, vector<1x8xf32> -> vector<1x8xf32>
    %cst_106 = arith.constant dense<0xFF800000> : vector<1xf32>
    %399 = vector.multi_reduction <maximumf>, %398, %cst_106 [1] : vector<1x8xf32> to vector<1xf32>
    %400 = vector.shape_cast %399 : vector<1xf32> to vector<1x1xf32>
    %401 = vector.broadcast %400 : vector<1x1xf32> to vector<1x8xf32>
    %402 = arith.subf %398, %401 : vector<1x8xf32>
    %403 = math.exp %402 : vector<1x8xf32>
    %cst_107 = arith.constant dense<0.000000e+00> : vector<1xf32>
    %404 = vector.multi_reduction <add>, %403, %cst_107 [1] : vector<1x8xf32> to vector<1xf32>
    %405 = vector.shape_cast %404 : vector<1xf32> to vector<1x1xf32>
    %406 = math.log %405 : vector<1x1xf32>
    %407 = arith.addf %406, %400 : vector<1x1xf32>
    %408 = vector.broadcast %407 : vector<1x1xf32> to vector<1x8xf32>
    %409 = arith.subf %398, %408 : vector<1x8xf32>
    %cst_108 = arith.constant dense<0.000000e+00> : vector<1x32xf32>
    %410 = tpu.matmul %409, %389, %cst_108 {dimension_numbers = #tpu.dot_dimension_numbers<[1], [0], [0], [1], [0, 0, 1, 1], [], []>} : vector<1x8xf32>, vector<8x32xf32>, vector<1x32xf32> -> vector<1x32xf32>
    %c120 = arith.constant 120 : index
    %c0_109 = arith.constant 0 : index
    %411 = vector.load %arg3[%c120, %c0_109] : memref<224x128xf32, #tpu.memory_space<vmem>>, vector<32x33xf32>
    %c152 = arith.constant 152 : index
    %c0_110 = arith.constant 0 : index
    %412 = vector.load %arg3[%c152, %c0_110] : memref<224x128xf32, #tpu.memory_space<vmem>>, vector<32x33xf32>
    %cst_111 = arith.constant dense<0.000000e+00> : vector<1x33xf32>
    %413 = tpu.matmul %388, %411, %cst_111 {dimension_numbers = #tpu.dot_dimension_numbers<[1], [0], [0], [1], [0, 0, 1, 1], [], []>} : vector<1x32xf32>, vector<32x33xf32>, vector<1x33xf32> -> vector<1x33xf32>
    %cst_112 = arith.constant dense<0.000000e+00> : vector<1x33xf32>
    %414 = tpu.matmul %410, %412, %cst_112 {dimension_numbers = #tpu.dot_dimension_numbers<[1], [0], [0], [1], [0, 0, 1, 1], [], []>} : vector<1x32xf32>, vector<32x33xf32>, vector<1x33xf32> -> vector<1x33xf32>
    %415 = arith.addf %413, %414 : vector<1x33xf32>
    %416 = vector.extract_strided_slice %415 {offsets = [0, 0], sizes = [1, 32], strides = [1, 1]} : vector<1x33xf32> to vector<1x32xf32>
    %417 = math.tanh %416 : vector<1x32xf32>
    %c216 = arith.constant 216 : index
    %c0_113 = arith.constant 0 : index
    %418 = vector.load %arg3[%c216, %c0_113] : memref<224x128xf32, #tpu.memory_space<vmem>>, vector<1x13xf32>
    %419 = vector.extract_strided_slice %415 {offsets = [0, 32], sizes = [1, 1], strides = [1, 1]} : vector<1x33xf32> to vector<1x1xf32>
    %420 = vector.extract_strided_slice %418 {offsets = [0, 12], sizes = [1, 1], strides = [1, 1]} : vector<1x13xf32> to vector<1x1xf32>
    %421 = arith.addf %419, %420 : vector<1x1xf32>
    %cst_114 = arith.constant 5.000000e-01 : f32
    %422 = vector.broadcast %cst_114 : f32 to vector<1x1xf32>
    %423 = arith.mulf %422, %421 : vector<1x1xf32>
    %424 = math.tanh %423 : vector<1x1xf32>
    %cst_115 = arith.constant 5.000000e-01 : f32
    %425 = vector.broadcast %cst_115 : f32 to vector<1x1xf32>
    %426 = arith.mulf %425, %424 : vector<1x1xf32>
    %cst_116 = arith.constant 5.000000e-01 : f32
    %427 = vector.broadcast %cst_116 : f32 to vector<1x1xf32>
    %428 = arith.addf %426, %427 : vector<1x1xf32>
    %c184 = arith.constant 184 : index
    %c0_117 = arith.constant 0 : index
    %429 = vector.load %arg3[%c184, %c0_117] : memref<224x128xf32, #tpu.memory_space<vmem>>, vector<32x12xf32>
    %cst_118 = arith.constant dense<0.000000e+00> : vector<1x12xf32>
    %430 = tpu.matmul %417, %429, %cst_118 {dimension_numbers = #tpu.dot_dimension_numbers<[1], [0], [0], [1], [0, 0, 1, 1], [], []>} : vector<1x32xf32>, vector<32x12xf32>, vector<1x12xf32> -> vector<1x12xf32>
    %431 = vector.extract_strided_slice %418 {offsets = [0, 0], sizes = [1, 12], strides = [1, 1]} : vector<1x13xf32> to vector<1x12xf32>
    %432 = arith.addf %430, %431 : vector<1x12xf32>
    %cst_119 = arith.constant dense<0xFF800000> : vector<1xf32>
    %433 = vector.multi_reduction <maximumf>, %432, %cst_119 [1] : vector<1x12xf32> to vector<1xf32>
    %434 = vector.shape_cast %433 : vector<1xf32> to vector<1x1xf32>
    %435 = vector.broadcast %434 : vector<1x1xf32> to vector<1x12xf32>
    %436 = arith.subf %432, %435 : vector<1x12xf32>
    %437 = math.exp %436 : vector<1x12xf32>
    %cst_120 = arith.constant dense<0.000000e+00> : vector<1xf32>
    %438 = vector.multi_reduction <add>, %437, %cst_120 [1] : vector<1x12xf32> to vector<1xf32>
    %439 = vector.shape_cast %438 : vector<1xf32> to vector<1x1xf32>
    %440 = math.log %439 : vector<1x1xf32>
    %441 = arith.addf %440, %434 : vector<1x1xf32>
    %442 = vector.broadcast %441 : vector<1x1xf32> to vector<1x12xf32>
    %443 = arith.subf %432, %442 : vector<1x12xf32>
    %444 = vector.broadcast %428 : vector<1x1xf32> to vector<1x12xf32>
    %445 = arith.mulf %444, %443 : vector<1x12xf32>
    %cst_121 = arith.constant 1.000000e+00 : f32
    %446 = vector.broadcast %cst_121 : f32 to vector<1x1xf32>
    %447 = arith.subf %446, %428 : vector<1x1xf32>
    %448 = vector.broadcast %447 : vector<1x1xf32> to vector<1x8xf32>
    %449 = arith.mulf %448, %409 : vector<1x8xf32>
    %450 = tpu.concatenate %445, %449 in 1 : vector<1x12xf32>, vector<1x8xf32> -> vector<1x20xf32>
    %c0_122 = arith.constant 0 : index
    %c0_123 = arith.constant 0 : index
    %451 = vector.load %arg5[%c0_122, %c0_123] : memref<1x20xf32, #tpu.memory_space<vmem>>, vector<1x20xf32>
    tpu.vector_store %arg5[%c0_122, %c0_123], %450 {strides = array<i32>} : memref<1x20xf32, #tpu.memory_space<vmem>>, vector<1x20xf32>,
    return
  }
  func.func @transform_0(%arg0: i32, %arg1: memref<16xi32, #tpu.memory_space<smem>>, %arg2: memref<16xi32, #tpu.memory_space<smem>>) -> (i32, i32) {
    %c0_i32 = arith.constant 0 : i32
    %c0_i32_0 = arith.constant 0 : i32
    %c0_i32_1 = arith.constant 0 : i32
    return %c0_i32, %c0_i32_0 : i32, i32
  }
  func.func @transform_1(%arg0: i32, %arg1: memref<16xi32, #tpu.memory_space<smem>>, %arg2: memref<16xi32, #tpu.memory_space<smem>>) -> (i32, i32) {
    %c0_i32 = arith.constant 0 : i32
    %c0_i32_0 = arith.constant 0 : i32
    %c0_i32_1 = arith.constant 0 : i32
    return %c0_i32, %c0_i32_0 : i32, i32
  }
  func.func @transform_2(%arg0: i32, %arg1: memref<16xi32, #tpu.memory_space<smem>>, %arg2: memref<16xi32, #tpu.memory_space<smem>>) -> (i32, i32) {
    %c0_i32 = arith.constant 0 : i32
    %c0_i32_0 = arith.constant 0 : i32
    %c0_i32_1 = arith.constant 0 : i32
    return %c0_i32, %c0_i32_0 : i32, i32
  }
}

</mosaic_0001>

<llo_original>
// kernel: main_model_forward.1
$region0: #{main_model_forward.1}
  #allocation0 [shape = 'u32[]', space=smem, size = 0x4, offset = 0x4, fixed_abs, tag = 'smem constant byte address 0x4 - core index']
  #allocation1 [shape = 'u32[72,128]{1,0:T(1,128)}', space=vmem, size = 0x9000, scoped, tag = 'internal scratch']
  #allocation2 [shape = 's32[1]{0}', space=sflag, size = 0x4, scoped, tag = 'scoped memory for main_model_forward.1']
  #allocation3 [shape = 'u8[512]{0}', space=smem, size = 0x200, scoped, tag = 'prefetched SMEM operand 0']
  #allocation4 [shape = 'u8[512]{0}', space=smem, size = 0x200, scoped, tag = 'prefetched SMEM operand 1']
  %s0 = inlined_call_operand.vmem [shape: s32[16], index: 0, kind: input, shape index: {}]
  %s1 = inlined_call_operand.vmem [shape: s32[16], index: 1, kind: input, shape index: {}]
  %s2 = inlined_call_operand.hbm [shape: f32[224,128], index: 2, kind: input, shape index: {}]
  %s3 = inlined_call_operand.vmem [shape: f32[2,32], index: 3, kind: input, shape index: {}]
  %s4 = inlined_call_operand.hbm [shape: f32[1,20], index: 4, kind: output, shape index: {}]
  %s5 = sld [smem:[#allocation0]]
  $region22: #{main_model_forward.1} parent=0
    _
  %s7 = ssub.s32 1, %s5
  %s8 = scalar_select 0, %s7, %s5
  %s10 = sshll.u32 %s0, 4
  %s11 = int_to_ptr.vmem [resolvable:$true] %s10
  %13 = dma.vmem_to_smem %s11, 16, [#allocation3], [#allocation2]
  %s15 = sshll.u32 %s1, 4
  %s16 = int_to_ptr.vmem [resolvable:$true] %s15
  %18 = dma.vmem_to_smem %s16, 16, [#allocation4], [#allocation2]
  %20 = dma.done [#allocation2], 32
  %21 = sfence
  $region1: #{main_model_forward.1} parent=0
    #allocation5 [shape = 'u8[114688]{0}', space=vmem, size = 0x1c000, scoped, tag = 'input window, operand 2, single buffered']
    #allocation6 [shape = 's32[1]{0}', space=sflag, size = 0x4, scoped, tag = 'scoped memory for main_model_forward.1']
    #allocation7 [shape = 's32[1]{0}', space=sflag, size = 0x4, scoped, tag = 'scoped memory for main_model_forward.1']
    #allocation8 [shape = 'u8[512]{0}', space=vmem, size = 0x400, scoped, tag = 'output window, operand 0, single buffered']
    %22 = vsyncpa [#allocation6], 0
    %23 = vsyncpa [#allocation7], 0
    // Predicated region
    $region2: #{main_model_forward.1} parent=1 // pred_check
      _
    $region3: #{main_model_forward.1} parent=1 // pred_check_branch
      %25 = sbr.rel (0) target = $region5
    $region4: #{main_model_forward.1} parent=1 // pred_region
      %27 = vsyncadd [#allocation6], 0
      %s28 = sshll.u32 %s2, 4
      %s29 = int_to_ptr.hbm [resolvable:$true] %s28
      %s30 = sshll.u32 [#allocation5], 4
      %s31 = int_to_ptr.vmem [resolvable:$true] %s30
      %36 = dma.hbm_to_vmem [thread:$0]  %s29, 3584, %s31, [#allocation6], 128, 128, 8
    $region5: #{main_model_forward.1} parent=1 // pred_fallthru
      _
    // Predicated region
    $region6: #{main_model_forward.1} parent=1 // pred_check
      _
    $region7: #{main_model_forward.1} parent=1 // pred_check_branch
      %38 = sbr.rel (0) target = $region9
    $region8: #{main_model_forward.1} parent=1 // pred_region
      _
    $region9: #{main_model_forward.1} parent=1 // pred_fallthru
      _
    // Predicated region
    $region10: #{main_model_forward.1} parent=1 // pred_check
      _
    $region11: #{main_model_forward.1} parent=1 // pred_check_branch
      %40 = sbr.rel (0) target = $region13
    $region12: #{main_model_forward.1} parent=1 // pred_region
      %42 = dma.done [#allocation6], 3584
    $region13: #{main_model_forward.1} parent=1 // pred_fallthru
      _
    %v43 = vld [vmem:[#allocation5 + $0x16] sm:$0xff]
    %v44 = vld [vmem:[#allocation5 + $0x1e] sm:$0xff]
    %v45 = vld [vmem:[#allocation5 + $0x26] sm:$0xff]
    %v46 = vld [vmem:[#allocation5 + $0x2e] sm:$0xff]
    %v47 = vld [vmem:[#allocation5 + $0x36] sm:$0x1]
    %v48 = vld [vmem:[#allocation5 + $0x37] sm:$0x1]
    %s49 = sld [smem:[#allocation3]]
    %s50 = sld [smem:[#allocation4]]
    %s51 = scalar_lea.vmem [#allocation5], %s49
    %v52 = vld [vmem:[%s51] sm:$0x1]
    %s53 = sadd.s32 %s50, 12
    %s54 = scalar_lea.vmem [#allocation5], %s53
    %v55 = vld [vmem:[%s54] sm:$0x1]
    %v56 = vadd.f32 %v52, %v55
    %s57 = sld [smem:[#allocation3 + $0x1]]
    %s58 = sld [smem:[#allocation4 + $0x1]]
    %s59 = scalar_lea.vmem [#allocation5], %s57
    %v60 = vld [vmem:[%s59] sm:$0x1]
    %s61 = sadd.s32 %s58, 12
    %s62 = scalar_lea.vmem [#allocation5], %s61
    %v63 = vld [vmem:[%s62] sm:$0x1]
    %v64 = vadd.f32 %v60, %v63
    %s65 = sld [smem:[#allocation3 + $0x2]]
    %s66 = sld [smem:[#allocation4 + $0x2]]
    %s67 = scalar_lea.vmem [#allocation5], %s65
    %v68 = vld [vmem:[%s67] sm:$0x1]
    %s69 = sadd.s32 %s66, 12
    %s70 = scalar_lea.vmem [#allocation5], %s69
    %v71 = vld [vmem:[%s70] sm:$0x1]
    %v72 = vadd.f32 %v68, %v71
    %s73 = sld [smem:[#allocation3 + $0x3]]
    %s74 = sld [smem:[#allocation4 + $0x3]]
    %s75 = scalar_lea.vmem [#allocation5], %s73
    %v76 = vld [vmem:[%s75] sm:$0x1]
    %s77 = sadd.s32 %s74, 12
    %s78 = scalar_lea.vmem [#allocation5], %s77
    %v79 = vld [vmem:[%s78] sm:$0x1]
    %v80 = vadd.f32 %v76, %v79
    %s81 = sld [smem:[#allocation3 + $0x4]]
    %s82 = sld [smem:[#allocation4 + $0x4]]
    %s83 = scalar_lea.vmem [#allocation5], %s81
    %v84 = vld [vmem:[%s83] sm:$0x1]
    %s85 = sadd.s32 %s82, 12
    %s86 = scalar_lea.vmem [#allocation5], %s85
    %v87 = vld [vmem:[%s86] sm:$0x1]
    %v88 = vadd.f32 %v84, %v87
    %s89 = sld [smem:[#allocation3 + $0x5]]
    %s90 = sld [smem:[#allocation4 + $0x5]]
    %s91 = scalar_lea.vmem [#allocation5], %s89
    %v92 = vld [vmem:[%s91] sm:$0x1]
    %s93 = sadd.s32 %s90, 12
    %s94 = scalar_lea.vmem [#allocation5], %s93
    %v95 = vld [vmem:[%s94] sm:$0x1]
    %v96 = vadd.f32 %v92, %v95
    %s97 = sld [smem:[#allocation3 + $0x6]]
    %s98 = sld [smem:[#allocation4 + $0x6]]
    %s99 = scalar_lea.vmem [#allocation5], %s97
    %v100 = vld [vmem:[%s99] sm:$0x1]
    %s101 = sadd.s32 %s98, 12
    %s102 = scalar_lea.vmem [#allocation5], %s101
    %v103 = vld [vmem:[%s102] sm:$0x1]
    %v104 = vadd.f32 %v100, %v103
    %s105 = sld [smem:[#allocation3 + $0x7]]
    %s106 = sld [smem:[#allocation4 + $0x7]]
    %s107 = scalar_lea.vmem [#allocation5], %s105
    %v108 = vld [vmem:[%s107] sm:$0x1]
    %s109 = sadd.s32 %s106, 12
    %s110 = scalar_lea.vmem [#allocation5], %s109
    %v111 = vld [vmem:[%s110] sm:$0x1]
    %v112 = vadd.f32 %v108, %v111
    %s113 = sld [smem:[#allocation3 + $0x8]]
    %s114 = sld [smem:[#allocation4 + $0x8]]
    %s115 = scalar_lea.vmem [#allocation5], %s113
    %v116 = vld [vmem:[%s115] sm:$0x1]
    %s117 = sadd.s32 %s114, 12
    %s118 = scalar_lea.vmem [#allocation5], %s117
    %v119 = vld [vmem:[%s118] sm:$0x1]
    %v120 = vadd.f32 %v116, %v119
    %s121 = sld [smem:[#allocation3 + $0x9]]
    %s122 = sld [smem:[#allocation4 + $0x9]]
    %s123 = scalar_lea.vmem [#allocation5], %s121
    %v124 = vld [vmem:[%s123] sm:$0x1]
    %s125 = sadd.s32 %s122, 12
    %s126 = scalar_lea.vmem [#allocation5], %s125
    %v127 = vld [vmem:[%s126] sm:$0x1]
    %v128 = vadd.f32 %v124, %v127
    %s129 = sld [smem:[#allocation3 + $0xa]]
    %s130 = sld [smem:[#allocation4 + $0xa]]
    %s131 = scalar_lea.vmem [#allocation5], %s129
    %v132 = vld [vmem:[%s131] sm:$0x1]
    %s133 = sadd.s32 %s130, 12
    %s134 = scalar_lea.vmem [#allocation5], %s133
    %v135 = vld [vmem:[%s134] sm:$0x1]
    %v136 = vadd.f32 %v132, %v135
    %s137 = sld [smem:[#allocation3 + $0xb]]
    %s138 = sld [smem:[#allocation4 + $0xb]]
    %s139 = scalar_lea.vmem [#allocation5], %s137
    %v140 = vld [vmem:[%s139] sm:$0x1]
    %s141 = sadd.s32 %s138, 12
    %s142 = scalar_lea.vmem [#allocation5], %s141
    %v143 = vld [vmem:[%s142] sm:$0x1]
    %v144 = vadd.f32 %v140, %v143
    %s145 = sld [smem:[#allocation3 + $0xc]]
    %s146 = sld [smem:[#allocation4 + $0xc]]
    %s147 = scalar_lea.vmem [#allocation5], %s145
    %v148 = vld [vmem:[%s147] sm:$0x1]
    %s149 = sadd.s32 %s146, 12
    %s150 = scalar_lea.vmem [#allocation5], %s149
    %v151 = vld [vmem:[%s150] sm:$0x1]
    %v152 = vadd.f32 %v148, %v151
    %s153 = sld [smem:[#allocation3 + $0xd]]
    %s154 = sld [smem:[#allocation4 + $0xd]]
    %s155 = scalar_lea.vmem [#allocation5], %s153
    %v156 = vld [vmem:[%s155] sm:$0x1]
    %s157 = sadd.s32 %s154, 12
    %s158 = scalar_lea.vmem [#allocation5], %s157
    %v159 = vld [vmem:[%s158] sm:$0x1]
    %v160 = vadd.f32 %v156, %v159
    %s161 = sld [smem:[#allocation3 + $0xe]]
    %s162 = sld [smem:[#allocation4 + $0xe]]
    %s163 = scalar_lea.vmem [#allocation5], %s161
    %v164 = vld [vmem:[%s163] sm:$0x1]
    %s165 = sadd.s32 %s162, 12
    %s166 = scalar_lea.vmem [#allocation5], %s165
    %v167 = vld [vmem:[%s166] sm:$0x1]
    %v168 = vadd.f32 %v164, %v167
    %s169 = sld [smem:[#allocation3 + $0xf]]
    %s170 = sld [smem:[#allocation4 + $0xf]]
    %s171 = scalar_lea.vmem [#allocation5], %s169
    %v172 = vld [vmem:[%s171] sm:$0x1]
    %s173 = sadd.s32 %s170, 12
    %s174 = scalar_lea.vmem [#allocation5], %s173
    %v175 = vld [vmem:[%s174] sm:$0x1]
    %v176 = vadd.f32 %v172, %v175
    %v177 = vld [vmem:[%s3] sm:$0x1]
    %v178 = vld [vmem:[%s3 + $0x1] sm:$0x1]
    %vm179 = vcmask 261120
    %v181 = vsel %vm179, %v177, 0
    %183 = vmatpush.msra.mxu0 0.0
    %184 = vmatpush.msra.mxu0 0.0
    %185 = vmatpush.msra.mxu0 0.0
    %186 = vmatpush.msra.mxu0 0.0
    %187 = vmatpush.msra.mxu0 0.0
    %188 = vmatpush.msra.mxu0 0.0
    %189 = vmatpush.msra.mxu0 0.0
    %190 = vmatpush.msra.mxu0 0.0
    %191 = vmatpush.msra.mxu0 0.0
    %192 = vmatpush.msra.mxu0 0.0
    %193 = vmatpush.msra.mxu0 0.0
    %194 = vmatpush.msra.mxu0 0.0
    %195 = vmatpush.msra.mxu0 %v46
    %196 = vmatpush.msra.mxu0 %v45
    %197 = vmatpush.msra.mxu0 %v44
    %198 = vmatpush.msra.mxu0 %v43
    %199 = vmatmul.f32.gmra.mxu0 %v181
    %v200 = vpop.f32.mrf.mxu0
    %v201 = vadd.f32 0.0, %v200
    %202 = vdwg.mxu0
    %v203 = vadd.f32 %v56, %v201
    %v204 = vmul.f32 %v203, %v47
    %v205 = vtanh.pop %v204
    %v206 = vmul.f32 %v205, %v47
    %v207 = vadd.f32 %v206, %v48
    %209 = vrot.lane.b32.xlu0 %v178, 32
    %v210 = vpop.permute.xlu0 %209
    %v212 = vmul.f32 %v207, %v210
    %214 = vrot.lane.b32.xlu0 %v207, 64
    %v215 = vpop.permute.xlu0 %214
    %v217 = vmul.f32 %v207, %v215
    %219 = vrot.lane.b32.xlu0 %v217, 32
    %v220 = vpop.permute.xlu0 %219
    %v222 = vadd.f32 %v212, %v220
    %v223 = vtanh.pop %v222
    %225 = vrot.lane.b32.xlu0 %v223, 64
    %v226 = vpop.permute.xlu0 %225
    %v228 = vmul.f32 %v207, %v226
    %230 = vrot.lane.b32.xlu0 %v228, 32
    %v231 = vpop.permute.xlu0 %230
    %v232 = vsel %vm179, %v231, 0
    %234 = vmatpush.msra.mxu0 0.0
    %235 = vmatpush.msra.mxu0 0.0
    %236 = vmatpush.msra.mxu0 0.0
    %237 = vmatpush.msra.mxu0 0.0
    %238 = vmatpush.msra.mxu0 0.0
    %239 = vmatpush.msra.mxu0 0.0
    %240 = vmatpush.msra.mxu0 0.0
    %241 = vmatpush.msra.mxu0 0.0
    %242 = vmatpush.msra.mxu0 0.0
    %243 = vmatpush.msra.mxu0 0.0
    %244 = vmatpush.msra.mxu0 0.0
    %245 = vmatpush.msra.mxu0 0.0
    %246 = vmatpush.msra.mxu0 %v46
    %247 = vmatpush.msra.mxu0 %v45
    %248 = vmatpush.msra.mxu0 %v44
    %249 = vmatpush.msra.mxu0 %v43
    %250 = vmatmul.f32.gmra.mxu0 %v232
    %v251 = vpop.f32.mrf.mxu0
    %v252 = vadd.f32 0.0, %v251
    %253 = vdwg.mxu0
    %v254 = vadd.f32 %v64, %v252
    %v255 = vmul.f32 %v254, %v47
    %v256 = vtanh.pop %v255
    %v257 = vmul.f32 %v256, %v47
    %v258 = vadd.f32 %v257, %v48
    %v259 = vmul.f32 %v258, %v222
    %261 = vrot.lane.b32.xlu0 %v258, 64
    %v262 = vpop.permute.xlu0 %261
    %v264 = vmul.f32 %v258, %v262
    %266 = vrot.lane.b32.xlu0 %v264, 32
    %v267 = vpop.permute.xlu0 %266
    %v269 = vadd.f32 %v259, %v267
    %v270 = vtanh.pop %v269
    %272 = vrot.lane.b32.xlu0 %v270, 64
    %v273 = vpop.permute.xlu0 %272
    %v275 = vmul.f32 %v258, %v273
    %277 = vrot.lane.b32.xlu0 %v275, 32
    %v278 = vpop.permute.xlu0 %277
    %v279 = vsel %vm179, %v278, 0
    %281 = vmatpush.msra.mxu0 0.0
    %282 = vmatpush.msra.mxu0 0.0
    %283 = vmatpush.msra.mxu0 0.0
    %284 = vmatpush.msra.mxu0 0.0
    %285 = vmatpush.msra.mxu0 0.0
    %286 = vmatpush.msra.mxu0 0.0
    %287 = vmatpush.msra.mxu0 0.0
    %288 = vmatpush.msra.mxu0 0.0
    %289 = vmatpush.msra.mxu0 0.0
    %290 = vmatpush.msra.mxu0 0.0
    %291 = vmatpush.msra.mxu0 0.0
    %292 = vmatpush.msra.mxu0 0.0
    %293 = vmatpush.msra.mxu0 %v46
    %294 = vmatpush.msra.mxu0 %v45
    %295 = vmatpush.msra.mxu0 %v44
    %296 = vmatpush.msra.mxu0 %v43
    %297 = vmatmul.f32.gmra.mxu0 %v279
    %v298 = vpop.f32.mrf.mxu0
    %v299 = vadd.f32 0.0, %v298
    %300 = vdwg.mxu0
    %v301 = vadd.f32 %v72, %v299
    %v302 = vmul.f32 %v301, %v47
    %v303 = vtanh.pop %v302
    %v304 = vmul.f32 %v303, %v47
    %v305 = vadd.f32 %v304, %v48
    %v306 = vmul.f32 %v305, %v269
    %308 = vrot.lane.b32.xlu0 %v305, 64
    %v309 = vpop.permute.xlu0 %308
    %v311 = vmul.f32 %v305, %v309
    %313 = vrot.lane.b32.xlu0 %v311, 32
    %v314 = vpop.permute.xlu0 %313
    %v316 = vadd.f32 %v306, %v314
    %v317 = vtanh.pop %v316
    %319 = vrot.lane.b32.xlu0 %v317, 64
    %v320 = vpop.permute.xlu0 %319
    %v322 = vmul.f32 %v305, %v320
    %324 = vrot.lane.b32.xlu0 %v322, 32
    %v325 = vpop.permute.xlu0 %324
    %v326 = vsel %vm179, %v325, 0
    %328 = vmatpush.msra.mxu0 0.0
    %329 = vmatpush.msra.mxu0 0.0
    %330 = vmatpush.msra.mxu0 0.0
    %331 = vmatpush.msra.mxu0 0.0
    %332 = vmatpush.msra.mxu0 0.0
    %333 = vmatpush.msra.mxu0 0.0
    %334 = vmatpush.msra.mxu0 0.0
    %335 = vmatpush.msra.mxu0 0.0
    %336 = vmatpush.msra.mxu0 0.0
    %337 = vmatpush.msra.mxu0 0.0
    %338 = vmatpush.msra.mxu0 0.0
    %339 = vmatpush.msra.mxu0 0.0
    %340 = vmatpush.msra.mxu0 %v46
    %341 = vmatpush.msra.mxu0 %v45
    %342 = vmatpush.msra.mxu0 %v44
    %343 = vmatpush.msra.mxu0 %v43
    %344 = vmatmul.f32.gmra.mxu0 %v326
    %v345 = vpop.f32.mrf.mxu0
    %v346 = vadd.f32 0.0, %v345
    %347 = vdwg.mxu0
    %v348 = vadd.f32 %v80, %v346
    %v349 = vmul.f32 %v348, %v47
    %v350 = vtanh.pop %v349
    %v351 = vmul.f32 %v350, %v47
    %v352 = vadd.f32 %v351, %v48
    %v353 = vmul.f32 %v352, %v316
    %355 = vrot.lane.b32.xlu0 %v352, 64
    %v356 = vpop.permute.xlu0 %355
    %v358 = vmul.f32 %v352, %v356
    %360 = vrot.lane.b32.xlu0 %v358, 32
    %v361 = vpop.permute.xlu0 %360
    %v363 = vadd.f32 %v353, %v361
    %v364 = vtanh.pop %v363
    %366 = vrot.lane.b32.xlu0 %v364, 64
    %v367 = vpop.permute.xlu0 %366
    %v369 = vmul.f32 %v352, %v367
    %371 = vrot.lane.b32.xlu0 %v369, 32
    %v372 = vpop.permute.xlu0 %371
    %v373 = vsel %vm179, %v372, 0
    %375 = vmatpush.msra.mxu0 0.0
    %376 = vmatpush.msra.mxu0 0.0
    %377 = vmatpush.msra.mxu0 0.0
    %378 = vmatpush.msra.mxu0 0.0
    %379 = vmatpush.msra.mxu0 0.0
    %380 = vmatpush.msra.mxu0 0.0
    %381 = vmatpush.msra.mxu0 0.0
    %382 = vmatpush.msra.mxu0 0.0
    %383 = vmatpush.msra.mxu0 0.0
    %384 = vmatpush.msra.mxu0 0.0
    %385 = vmatpush.msra.mxu0 0.0
    %386 = vmatpush.msra.mxu0 0.0
    %387 = vmatpush.msra.mxu0 %v46
    %388 = vmatpush.msra.mxu0 %v45
    %389 = vmatpush.msra.mxu0 %v44
    %390 = vmatpush.msra.mxu0 %v43
    %391 = vmatmul.f32.gmra.mxu0 %v373
    %v392 = vpop.f32.mrf.mxu0
    %v393 = vadd.f32 0.0, %v392
    %394 = vdwg.mxu0
    %v395 = vadd.f32 %v88, %v393
    %v396 = vmul.f32 %v395, %v47
    %v397 = vtanh.pop %v396
    %v398 = vmul.f32 %v397, %v47
    %v399 = vadd.f32 %v398, %v48
    %v400 = vmul.f32 %v399, %v363
    %402 = vrot.lane.b32.xlu0 %v399, 64
    %v403 = vpop.permute.xlu0 %402
    %v405 = vmul.f32 %v399, %v403
    %407 = vrot.lane.b32.xlu0 %v405, 32
    %v408 = vpop.permute.xlu0 %407
    %v410 = vadd.f32 %v400, %v408
    %v411 = vtanh.pop %v410
    %413 = vrot.lane.b32.xlu0 %v411, 64
    %v414 = vpop.permute.xlu0 %413
    %v416 = vmul.f32 %v399, %v414
    %418 = vrot.lane.b32.xlu0 %v416, 32
    %v419 = vpop.permute.xlu0 %418
    %v420 = vsel %vm179, %v419, 0
    %422 = vmatpush.msra.mxu0 0.0
    %423 = vmatpush.msra.mxu0 0.0
    %424 = vmatpush.msra.mxu0 0.0
    %425 = vmatpush.msra.mxu0 0.0
    %426 = vmatpush.msra.mxu0 0.0
    %427 = vmatpush.msra.mxu0 0.0
    %428 = vmatpush.msra.mxu0 0.0
    %429 = vmatpush.msra.mxu0 0.0
    %430 = vmatpush.msra.mxu0 0.0
    %431 = vmatpush.msra.mxu0 0.0
    %432 = vmatpush.msra.mxu0 0.0
    %433 = vmatpush.msra.mxu0 0.0
    %434 = vmatpush.msra.mxu0 %v46
    %435 = vmatpush.msra.mxu0 %v45
    %436 = vmatpush.msra.mxu0 %v44
    %437 = vmatpush.msra.mxu0 %v43
    %438 = vmatmul.f32.gmra.mxu0 %v420
    %v439 = vpop.f32.mrf.mxu0
    %v440 = vadd.f32 0.0, %v439
    %441 = vdwg.mxu0
    %v442 = vadd.f32 %v96, %v440
    %v443 = vmul.f32 %v442, %v47
    %v444 = vtanh.pop %v443
    %v445 = vmul.f32 %v444, %v47
    %v446 = vadd.f32 %v445, %v48
    %v447 = vmul.f32 %v446, %v410
    %449 = vrot.lane.b32.xlu0 %v446, 64
    %v450 = vpop.permute.xlu0 %449
    %v452 = vmul.f32 %v446, %v450
    %454 = vrot.lane.b32.xlu0 %v452, 32
    %v455 = vpop.permute.xlu0 %454
    %v457 = vadd.f32 %v447, %v455
    %v458 = vtanh.pop %v457
    %460 = vrot.lane.b32.xlu0 %v458, 64
    %v461 = vpop.permute.xlu0 %460
    %v463 = vmul.f32 %v446, %v461
    %465 = vrot.lane.b32.xlu0 %v463, 32
    %v466 = vpop.permute.xlu0 %465
    %v467 = vsel %vm179, %v466, 0
    %469 = vmatpush.msra.mxu0 0.0
    %470 = vmatpush.msra.mxu0 0.0
    %471 = vmatpush.msra.mxu0 0.0
    %472 = vmatpush.msra.mxu0 0.0
    %473 = vmatpush.msra.mxu0 0.0
    %474 = vmatpush.msra.mxu0 0.0
    %475 = vmatpush.msra.mxu0 0.0
    %476 = vmatpush.msra.mxu0 0.0
    %477 = vmatpush.msra.mxu0 0.0
    %478 = vmatpush.msra.mxu0 0.0
    %479 = vmatpush.msra.mxu0 0.0
    %480 = vmatpush.msra.mxu0 0.0
    %481 = vmatpush.msra.mxu0 %v46
    %482 = vmatpush.msra.mxu0 %v45
    %483 = vmatpush.msra.mxu0 %v44
    %484 = vmatpush.msra.mxu0 %v43
    %485 = vmatmul.f32.gmra.mxu0 %v467
    %v486 = vpop.f32.mrf.mxu0
    %v487 = vadd.f32 0.0, %v486
    %488 = vdwg.mxu0
    %v489 = vadd.f32 %v104, %v487
    %v490 = vmul.f32 %v489, %v47
    %v491 = vtanh.pop %v490
    %v492 = vmul.f32 %v491, %v47
    %v493 = vadd.f32 %v492, %v48
    %v494 = vmul.f32 %v493, %v457
    %496 = vrot.lane.b32.xlu0 %v493, 64
    %v497 = vpop.permute.xlu0 %496
    %v499 = vmul.f32 %v493, %v497
    %501 = vrot.lane.b32.xlu0 %v499, 32
    %v502 = vpop.permute.xlu0 %501
    %v504 = vadd.f32 %v494, %v502
    %v505 = vtanh.pop %v504
    %507 = vrot.lane.b32.xlu0 %v505, 64
    %v508 = vpop.permute.xlu0 %507
    %v510 = vmul.f32 %v493, %v508
    %512 = vrot.lane.b32.xlu0 %v510, 32
    %v513 = vpop.permute.xlu0 %512
    %v514 = vsel %vm179, %v513, 0
    %516 = vmatpush.msra.mxu0 0.0
    %517 = vmatpush.msra.mxu0 0.0
    %518 = vmatpush.msra.mxu0 0.0
    %519 = vmatpush.msra.mxu0 0.0
    %520 = vmatpush.msra.mxu0 0.0
    %521 = vmatpush.msra.mxu0 0.0
    %522 = vmatpush.msra.mxu0 0.0
    %523 = vmatpush.msra.mxu0 0.0
    %524 = vmatpush.msra.mxu0 0.0
    %525 = vmatpush.msra.mxu0 0.0
    %526 = vmatpush.msra.mxu0 0.0
    %527 = vmatpush.msra.mxu0 0.0
    %528 = vmatpush.msra.mxu0 %v46
    %529 = vmatpush.msra.mxu0 %v45
    %530 = vmatpush.msra.mxu0 %v44
    %531 = vmatpush.msra.mxu0 %v43
    %532 = vmatmul.f32.gmra.mxu0 %v514
    %v533 = vpop.f32.mrf.mxu0
    %v534 = vadd.f32 0.0, %v533
    %535 = vdwg.mxu0
    %v536 = vadd.f32 %v112, %v534
    %v537 = vmul.f32 %v536, %v47
    %v538 = vtanh.pop %v537
    %v539 = vmul.f32 %v538, %v47
    %v540 = vadd.f32 %v539, %v48
    %v541 = vmul.f32 %v540, %v504
    %543 = vrot.lane.b32.xlu0 %v540, 64
    %v544 = vpop.permute.xlu0 %543
    %v546 = vmul.f32 %v540, %v544
    %548 = vrot.lane.b32.xlu0 %v546, 32
    %v549 = vpop.permute.xlu0 %548
    %v551 = vadd.f32 %v541, %v549
    %v552 = vtanh.pop %v551
    %554 = vrot.lane.b32.xlu0 %v552, 64
    %v555 = vpop.permute.xlu0 %554
    %v557 = vmul.f32 %v540, %v555
    %559 = vrot.lane.b32.xlu0 %v557, 32
    %v560 = vpop.permute.xlu0 %559
    %v561 = vsel %vm179, %v560, 0
    %563 = vmatpush.msra.mxu0 0.0
    %564 = vmatpush.msra.mxu0 0.0
    %565 = vmatpush.msra.mxu0 0.0
    %566 = vmatpush.msra.mxu0 0.0
    %567 = vmatpush.msra.mxu0 0.0
    %568 = vmatpush.msra.mxu0 0.0
    %569 = vmatpush.msra.mxu0 0.0
    %570 = vmatpush.msra.mxu0 0.0
    %571 = vmatpush.msra.mxu0 0.0
    %572 = vmatpush.msra.mxu0 0.0
    %573 = vmatpush.msra.mxu0 0.0
    %574 = vmatpush.msra.mxu0 0.0
    %575 = vmatpush.msra.mxu0 %v46
    %576 = vmatpush.msra.mxu0 %v45
    %577 = vmatpush.msra.mxu0 %v44
    %578 = vmatpush.msra.mxu0 %v43
    %579 = vmatmul.f32.gmra.mxu0 %v561
    %v580 = vpop.f32.mrf.mxu0
    %v581 = vadd.f32 0.0, %v580
    %582 = vdwg.mxu0
    %v583 = vadd.f32 %v120, %v581
    %v584 = vmul.f32 %v583, %v47
    %v585 = vtanh.pop %v584
    %v586 = vmul.f32 %v585, %v47
    %v587 = vadd.f32 %v586, %v48
    %v588 = vmul.f32 %v587, %v551
    %590 = vrot.lane.b32.xlu0 %v587, 64
    %v591 = vpop.permute.xlu0 %590
    %v593 = vmul.f32 %v587, %v591
    %595 = vrot.lane.b32.xlu0 %v593, 32
    %v596 = vpop.permute.xlu0 %595
    %v598 = vadd.f32 %v588, %v596
    %v599 = vtanh.pop %v598
    %601 = vrot.lane.b32.xlu0 %v599, 64
    %v602 = vpop.permute.xlu0 %601
    %v604 = vmul.f32 %v587, %v602
    %606 = vrot.lane.b32.xlu0 %v604, 32
    %v607 = vpop.permute.xlu0 %606
    %v608 = vsel %vm179, %v607, 0
    %610 = vmatpush.msra.mxu0 0.0
    %611 = vmatpush.msra.mxu0 0.0
    %612 = vmatpush.msra.mxu0 0.0
    %613 = vmatpush.msra.mxu0 0.0
    %614 = vmatpush.msra.mxu0 0.0
    %615 = vmatpush.msra.mxu0 0.0
    %616 = vmatpush.msra.mxu0 0.0
    %617 = vmatpush.msra.mxu0 0.0
    %618 = vmatpush.msra.mxu0 0.0
    %619 = vmatpush.msra.mxu0 0.0
    %620 = vmatpush.msra.mxu0 0.0
    %621 = vmatpush.msra.mxu0 0.0
    %622 = vmatpush.msra.mxu0 %v46
    %623 = vmatpush.msra.mxu0 %v45
    %624 = vmatpush.msra.mxu0 %v44
    %625 = vmatpush.msra.mxu0 %v43
    %626 = vmatmul.f32.gmra.mxu0 %v608
    %v627 = vpop.f32.mrf.mxu0
    %v628 = vadd.f32 0.0, %v627
    %629 = vdwg.mxu0
    %v630 = vadd.f32 %v128, %v628
    %v631 = vmul.f32 %v630, %v47
    %v632 = vtanh.pop %v631
    %v633 = vmul.f32 %v632, %v47
    %v634 = vadd.f32 %v633, %v48
    %v635 = vmul.f32 %v634, %v598
    %637 = vrot.lane.b32.xlu0 %v634, 64
    %v638 = vpop.permute.xlu0 %637
    %v640 = vmul.f32 %v634, %v638
    %642 = vrot.lane.b32.xlu0 %v640, 32
    %v643 = vpop.permute.xlu0 %642
    %v645 = vadd.f32 %v635, %v643
    %v646 = vtanh.pop %v645
    %648 = vrot.lane.b32.xlu0 %v646, 64
    %v649 = vpop.permute.xlu0 %648
    %v651 = vmul.f32 %v634, %v649
    %653 = vrot.lane.b32.xlu0 %v651, 32
    %v654 = vpop.permute.xlu0 %653
    %v655 = vsel %vm179, %v654, 0
    %657 = vmatpush.msra.mxu0 0.0
    %658 = vmatpush.msra.mxu0 0.0
    %659 = vmatpush.msra.mxu0 0.0
    %660 = vmatpush.msra.mxu0 0.0
    %661 = vmatpush.msra.mxu0 0.0
    %662 = vmatpush.msra.mxu0 0.0
    %663 = vmatpush.msra.mxu0 0.0
    %664 = vmatpush.msra.mxu0 0.0
    %665 = vmatpush.msra.mxu0 0.0
    %666 = vmatpush.msra.mxu0 0.0
    %667 = vmatpush.msra.mxu0 0.0
    %668 = vmatpush.msra.mxu0 0.0
    %669 = vmatpush.msra.mxu0 %v46
    %670 = vmatpush.msra.mxu0 %v45
    %671 = vmatpush.msra.mxu0 %v44
    %672 = vmatpush.msra.mxu0 %v43
    %673 = vmatmul.f32.gmra.mxu0 %v655
    %v674 = vpop.f32.mrf.mxu0
    %v675 = vadd.f32 0.0, %v674
    %676 = vdwg.mxu0
    %v677 = vadd.f32 %v136, %v675
    %v678 = vmul.f32 %v677, %v47
    %v679 = vtanh.pop %v678
    %v680 = vmul.f32 %v679, %v47
    %v681 = vadd.f32 %v680, %v48
    %v682 = vmul.f32 %v681, %v645
    %684 = vrot.lane.b32.xlu0 %v681, 64
    %v685 = vpop.permute.xlu0 %684
    %v687 = vmul.f32 %v681, %v685
    %689 = vrot.lane.b32.xlu0 %v687, 32
    %v690 = vpop.permute.xlu0 %689
    %v692 = vadd.f32 %v682, %v690
    %v693 = vtanh.pop %v692
    %695 = vrot.lane.b32.xlu0 %v693, 64
    %v696 = vpop.permute.xlu0 %695
    %v698 = vmul.f32 %v681, %v696
    %700 = vrot.lane.b32.xlu0 %v698, 32
    %v701 = vpop.permute.xlu0 %700
    %v702 = vsel %vm179, %v701, 0
    %704 = vmatpush.msra.mxu0 0.0
    %705 = vmatpush.msra.mxu0 0.0
    %706 = vmatpush.msra.mxu0 0.0
    %707 = vmatpush.msra.mxu0 0.0
    %708 = vmatpush.msra.mxu0 0.0
    %709 = vmatpush.msra.mxu0 0.0
    %710 = vmatpush.msra.mxu0 0.0
    %711 = vmatpush.msra.mxu0 0.0
    %712 = vmatpush.msra.mxu0 0.0
    %713 = vmatpush.msra.mxu0 0.0
    %714 = vmatpush.msra.mxu0 0.0
    %715 = vmatpush.msra.mxu0 0.0
    %716 = vmatpush.msra.mxu0 %v46
    %717 = vmatpush.msra.mxu0 %v45
    %718 = vmatpush.msra.mxu0 %v44
    %719 = vmatpush.msra.mxu0 %v43
    %720 = vmatmul.f32.gmra.mxu0 %v702
    %v721 = vpop.f32.mrf.mxu0
    %v722 = vadd.f32 0.0, %v721
    %723 = vdwg.mxu0
    %v724 = vadd.f32 %v144, %v722
    %v725 = vmul.f32 %v724, %v47
    %v726 = vtanh.pop %v725
    %v727 = vmul.f32 %v726, %v47
    %v728 = vadd.f32 %v727, %v48
    %v729 = vmul.f32 %v728, %v692
    %731 = vrot.lane.b32.xlu0 %v728, 64
    %v732 = vpop.permute.xlu0 %731
    %v734 = vmul.f32 %v728, %v732
    %736 = vrot.lane.b32.xlu0 %v734, 32
    %v737 = vpop.permute.xlu0 %736
    %v739 = vadd.f32 %v729, %v737
    %v740 = vtanh.pop %v739
    %742 = vrot.lane.b32.xlu0 %v740, 64
    %v743 = vpop.permute.xlu0 %742
    %v745 = vmul.f32 %v728, %v743
    %747 = vrot.lane.b32.xlu0 %v745, 32
    %v748 = vpop.permute.xlu0 %747
    %v749 = vsel %vm179, %v748, 0
    %751 = vmatpush.msra.mxu0 0.0
    %752 = vmatpush.msra.mxu0 0.0
    %753 = vmatpush.msra.mxu0 0.0
    %754 = vmatpush.msra.mxu0 0.0
    %755 = vmatpush.msra.mxu0 0.0
    %756 = vmatpush.msra.mxu0 0.0
    %757 = vmatpush.msra.mxu0 0.0
    %758 = vmatpush.msra.mxu0 0.0
    %759 = vmatpush.msra.mxu0 0.0
    %760 = vmatpush.msra.mxu0 0.0
    %761 = vmatpush.msra.mxu0 0.0
    %762 = vmatpush.msra.mxu0 0.0
    %763 = vmatpush.msra.mxu0 %v46
    %764 = vmatpush.msra.mxu0 %v45
    %765 = vmatpush.msra.mxu0 %v44
    %766 = vmatpush.msra.mxu0 %v43
    %767 = vmatmul.f32.gmra.mxu0 %v749
    %v768 = vpop.f32.mrf.mxu0
    %v769 = vadd.f32 0.0, %v768
    %770 = vdwg.mxu0
    %v771 = vadd.f32 %v152, %v769
    %v772 = vmul.f32 %v771, %v47
    %v773 = vtanh.pop %v772
    %v774 = vmul.f32 %v773, %v47
    %v775 = vadd.f32 %v774, %v48
    %v776 = vmul.f32 %v775, %v739
    %778 = vrot.lane.b32.xlu0 %v775, 64
    %v779 = vpop.permute.xlu0 %778
    %v781 = vmul.f32 %v775, %v779
    %783 = vrot.lane.b32.xlu0 %v781, 32
    %v784 = vpop.permute.xlu0 %783
    %v786 = vadd.f32 %v776, %v784
    %v787 = vtanh.pop %v786
    %789 = vrot.lane.b32.xlu0 %v787, 64
    %v790 = vpop.permute.xlu0 %789
    %v792 = vmul.f32 %v775, %v790
    %794 = vrot.lane.b32.xlu0 %v792, 32
    %v795 = vpop.permute.xlu0 %794
    %v796 = vsel %vm179, %v795, 0
    %798 = vmatpush.msra.mxu0 0.0
    %799 = vmatpush.msra.mxu0 0.0
    %800 = vmatpush.msra.mxu0 0.0
    %801 = vmatpush.msra.mxu0 0.0
    %802 = vmatpush.msra.mxu0 0.0
    %803 = vmatpush.msra.mxu0 0.0
    %804 = vmatpush.msra.mxu0 0.0
    %805 = vmatpush.msra.mxu0 0.0
    %806 = vmatpush.msra.mxu0 0.0
    %807 = vmatpush.msra.mxu0 0.0
    %808 = vmatpush.msra.mxu0 0.0
    %809 = vmatpush.msra.mxu0 0.0
    %810 = vmatpush.msra.mxu0 %v46
    %811 = vmatpush.msra.mxu0 %v45
    %812 = vmatpush.msra.mxu0 %v44
    %813 = vmatpush.msra.mxu0 %v43
    %814 = vmatmul.f32.gmra.mxu0 %v796
    %v815 = vpop.f32.mrf.mxu0
    %v816 = vadd.f32 0.0, %v815
    %817 = vdwg.mxu0
    %v818 = vadd.f32 %v160, %v816
    %v819 = vmul.f32 %v818, %v47
    %v820 = vtanh.pop %v819
    %v821 = vmul.f32 %v820, %v47
    %v822 = vadd.f32 %v821, %v48
    %v823 = vmul.f32 %v822, %v786
    %825 = vrot.lane.b32.xlu0 %v822, 64
    %v826 = vpop.permute.xlu0 %825
    %v828 = vmul.f32 %v822, %v826
    %830 = vrot.lane.b32.xlu0 %v828, 32
    %v831 = vpop.permute.xlu0 %830
    %v833 = vadd.f32 %v823, %v831
    %v834 = vtanh.pop %v833
    %836 = vrot.lane.b32.xlu0 %v834, 64
    %v837 = vpop.permute.xlu0 %836
    %v839 = vmul.f32 %v822, %v837
    %841 = vrot.lane.b32.xlu0 %v839, 32
    %v842 = vpop.permute.xlu0 %841
    %v843 = vsel %vm179, %v842, 0
    %845 = vmatpush.msra.mxu0 0.0
    %846 = vmatpush.msra.mxu0 0.0
    %847 = vmatpush.msra.mxu0 0.0
    %848 = vmatpush.msra.mxu0 0.0
    %849 = vmatpush.msra.mxu0 0.0
    %850 = vmatpush.msra.mxu0 0.0
    %851 = vmatpush.msra.mxu0 0.0
    %852 = vmatpush.msra.mxu0 0.0
    %853 = vmatpush.msra.mxu0 0.0
    %854 = vmatpush.msra.mxu0 0.0
    %855 = vmatpush.msra.mxu0 0.0
    %856 = vmatpush.msra.mxu0 0.0
    %857 = vmatpush.msra.mxu0 %v46
    %858 = vmatpush.msra.mxu0 %v45
    %859 = vmatpush.msra.mxu0 %v44
    %860 = vmatpush.msra.mxu0 %v43
    %861 = vmatmul.f32.gmra.mxu0 %v843
    %v862 = vpop.f32.mrf.mxu0
    %v863 = vadd.f32 0.0, %v862
    %864 = vdwg.mxu0
    %v865 = vadd.f32 %v168, %v863
    %v866 = vmul.f32 %v865, %v47
    %v867 = vtanh.pop %v866
    %v868 = vmul.f32 %v867, %v47
    %v869 = vadd.f32 %v868, %v48
    %v870 = vmul.f32 %v869, %v833
    %872 = vrot.lane.b32.xlu0 %v869, 64
    %v873 = vpop.permute.xlu0 %872
    %v875 = vmul.f32 %v869, %v873
    %877 = vrot.lane.b32.xlu0 %v875, 32
    %v878 = vpop.permute.xlu0 %877
    %v880 = vadd.f32 %v870, %v878
    %v881 = vtanh.pop %v880
    %883 = vrot.lane.b32.xlu0 %v881, 64
    %v884 = vpop.permute.xlu0 %883
    %v886 = vmul.f32 %v869, %v884
    %888 = vrot.lane.b32.xlu0 %v886, 32
    %v889 = vpop.permute.xlu0 %888
    %v890 = vsel %vm179, %v889, 0
    %892 = vmatpush.msra.mxu0 0.0
    %893 = vmatpush.msra.mxu0 0.0
    %894 = vmatpush.msra.mxu0 0.0
    %895 = vmatpush.msra.mxu0 0.0
    %896 = vmatpush.msra.mxu0 0.0
    %897 = vmatpush.msra.mxu0 0.0
    %898 = vmatpush.msra.mxu0 0.0
    %899 = vmatpush.msra.mxu0 0.0
    %900 = vmatpush.msra.mxu0 0.0
    %901 = vmatpush.msra.mxu0 0.0
    %902 = vmatpush.msra.mxu0 0.0
    %903 = vmatpush.msra.mxu0 0.0
    %904 = vmatpush.msra.mxu0 %v46
    %905 = vmatpush.msra.mxu0 %v45
    %906 = vmatpush.msra.mxu0 %v44
    %907 = vmatpush.msra.mxu0 %v43
    %908 = vmatmul.f32.gmra.mxu0 %v890
    %v909 = vpop.f32.mrf.mxu0
    %v910 = vadd.f32 0.0, %v909
    %911 = vdwg.mxu0
    %v912 = vadd.f32 %v176, %v910
    %v913 = vmul.f32 %v912, %v47
    %v914 = vtanh.pop %v913
    %v915 = vmul.f32 %v914, %v47
    %v916 = vadd.f32 %v915, %v48
    %v917 = vmul.f32 %v916, %v880
    %919 = vrot.lane.b32.xlu0 %v916, 64
    %v920 = vpop.permute.xlu0 %919
    %v922 = vmul.f32 %v916, %v920
    %924 = vrot.lane.b32.xlu0 %v922, 32
    %v925 = vpop.permute.xlu0 %924
    %v927 = vadd.f32 %v917, %v925
    %v928 = vtanh.pop %v927
    %930 = vrot.lane.b32.xlu0 %v928, 64
    %v931 = vpop.permute.xlu0 %930
    %v933 = vmul.f32 %v916, %v931
    %v934 = vrot.slane %v651, 7
    %v936 = vrot.slane %v698, 6
    %v938 = vrot.slane %v745, 5
    %v940 = vrot.slane %v792, 4
    %v942 = vrot.slane %v839, 3
    %v944 = vrot.slane %v886, 2
    %v947 = vrot.slane %v933, 1
    %vm949 = vcmask 1040384
    %v950 = vsel %vm949, %v604, %v934
    %vm951 = vcmask 1041408
    %v952 = vsel %vm951, %v950, %v936
    %vm953 = vcmask 1042432
    %v954 = vsel %vm953, %v952, %v938
    %vm955 = vcmask 1043456
    %v956 = vsel %vm955, %v954, %v940
    %vm957 = vcmask 1044480
    %v958 = vsel %vm957, %v956, %v942
    %vm959 = vcmask 1045504
    %v960 = vsel %vm959, %v958, %v944
    %vm961 = vcmask 1046528
    %v962 = vsel %vm961, %v960, %v947
    %v963 = vld [vmem:[#allocation5 + $0x38] sm:$0xff]
    %v964 = vld [vmem:[#allocation5 + $0x40] sm:$0xff]
    %v965 = vld [vmem:[#allocation5 + $0x48] sm:$0xff]
    %v966 = vld [vmem:[#allocation5 + $0x50] sm:$0xff]
    %v967 = vld [vmem:[#allocation5 + $0x58] sm:$0xff]
    %v968 = vld [vmem:[#allocation5 + $0x60] sm:$0xff]
    %v969 = vld [vmem:[#allocation5 + $0x68] sm:$0xff]
    %v970 = vld [vmem:[#allocation5 + $0x70] sm:$0xff]
    %971 = vrot.lane.b32.xlu0 %v933, 32
    %v972 = vpop.permute.xlu0 %971
    %v973 = vsel %vm179, %v972, 0
    %975 = vmatpush.msra.mxu0 0.0
    %976 = vmatpush.msra.mxu0 0.0
    %977 = vmatpush.msra.mxu0 0.0
    %978 = vmatpush.msra.mxu0 0.0
    %979 = vmatpush.msra.mxu0 0.0
    %980 = vmatpush.msra.mxu0 0.0
    %981 = vmatpush.msra.mxu0 0.0
    %982 = vmatpush.msra.mxu0 0.0
    %983 = vmatpush.msra.mxu0 0.0
    %984 = vmatpush.msra.mxu0 0.0
    %985 = vmatpush.msra.mxu0 0.0
    %986 = vmatpush.msra.mxu0 0.0
    %987 = vmatpush.msra.mxu0 %v970
    %988 = vmatpush.msra.mxu0 %v969
    %989 = vmatpush.msra.mxu0 %v968
    %990 = vmatpush.msra.mxu0 %v967
    %991 = vmatmul.f32.gmra.mxu0 %v973
    %v992 = vpop.f32.mrf.mxu0
    %v993 = vadd.f32 0.0, %v992
    %994 = vdwg.mxu0
    %v995 = vperm.slane %v993, 0
    %997 = vrot.lane.b32.xlu0 %v962, 32
    %v998 = vpop.permute.xlu0 %997
    %v999 = vsel %vm179, %v998, 0
    %1001 = vmatpush.msra.mxu0 0.0
    %1002 = vmatpush.msra.mxu0 0.0
    %1003 = vmatpush.msra.mxu0 0.0
    %1004 = vmatpush.msra.mxu0 0.0
    %1005 = vmatpush.msra.mxu0 0.0
    %1006 = vmatpush.msra.mxu0 0.0
    %1007 = vmatpush.msra.mxu0 0.0
    %1008 = vmatpush.msra.mxu0 0.0
    %1009 = vmatpush.msra.mxu0 0.0
    %1010 = vmatpush.msra.mxu0 0.0
    %1011 = vmatpush.msra.mxu0 0.0
    %1012 = vmatpush.msra.mxu0 0.0
    %1013 = vmatpush.msra.mxu0 %v966
    %1014 = vmatpush.msra.mxu0 %v965
    %1015 = vmatpush.msra.mxu0 %v964
    %1016 = vmatpush.msra.mxu0 %v963
    %1017 = vmatmul.f32.gmra.mxu0 %v999
    %v1018 = vpop.f32.mrf.mxu0
    %v1019 = vadd.f32 %v995, %v1018
    %1020 = vdwg.mxu0
    %v1021 = vtanh.pop %v1019
    %1022 = vxpose.xlu0.b32.start [1/16] 1.0, 128
    %1023 = vxpose.xlu0.b32.cont [2/16] 1.0, 128
    %1024 = vxpose.xlu0.b32.cont [3/16] 1.0, 128
    %1025 = vxpose.xlu0.b32.cont [4/16] 1.0, 128
    %1026 = vxpose.xlu0.b32.cont [5/16] 0.0, 128
    %1027 = vxpose.xlu0.b32.cont [6/16] 0.0, 128
    %1028 = vxpose.xlu0.b32.cont [7/16] 0.0, 128
    %1029 = vxpose.xlu0.b32.cont [8/16] 0.0, 128
    %1030 = vxpose.xlu0.b32.cont [9/16] 0.0, 128
    %1031 = vxpose.xlu0.b32.cont [10/16] 0.0, 128
    %1032 = vxpose.xlu0.b32.cont [11/16] 0.0, 128
    %1033 = vxpose.xlu0.b32.cont [12/16] 0.0, 128
    %1034 = vxpose.xlu0.b32.cont [13/16] 0.0, 128
    %1035 = vxpose.xlu0.b32.cont [14/16] 0.0, 128
    %1036 = vxpose.xlu0.b32.cont [15/16] 0.0, 128
    %1037 = vxpose.xlu0.b32.end [16/16] 0.0, 128
    %v1038 = vpop.trf.xlu0
    %v1039 = vpop.trf.xlu0
    %v1040 = vpop.trf.xlu0
    %v1041 = vpop.trf.xlu0
    %v1042 = vpop.trf.xlu0
    %v1043 = vpop.trf.xlu0
    %v1044 = vpop.trf.xlu0
    %v1045 = vpop.trf.xlu0
    %v1046 = vpop.trf.xlu0
    %v1047 = vpop.trf.xlu0
    %v1048 = vpop.trf.xlu0
    %v1049 = vpop.trf.xlu0
    %v1050 = vpop.trf.xlu0
    %v1051 = vpop.trf.xlu0
    %v1052 = vpop.trf.xlu0
    %v1053 = vpop.trf.xlu0
    %v1055 = vsel %vm179, %v1038, 0
    %v1058 = vsel %vm179, %v1021, 0
    %1060 = vmatpush.xpose.msra.mxu0 0.0
    %1061 = vmatpush.xpose.msra.mxu0 0.0
    %1062 = vmatpush.xpose.msra.mxu0 0.0
    %1063 = vmatpush.xpose.msra.mxu0 0.0
    %1064 = vmatpush.xpose.msra.mxu0 0.0
    %1065 = vmatpush.xpose.msra.mxu0 0.0
    %1066 = vmatpush.xpose.msra.mxu0 0.0
    %1067 = vmatpush.xpose.msra.mxu0 0.0
    %1068 = vmatpush.xpose.msra.mxu0 0.0
    %1069 = vmatpush.xpose.msra.mxu0 0.0
    %1070 = vmatpush.xpose.msra.mxu0 0.0
    %1071 = vmatpush.xpose.msra.mxu0 0.0
    %1072 = vmatpush.xpose.msra.mxu0 0.0
    %1073 = vmatpush.xpose.msra.mxu0 0.0
    %1074 = vmatpush.xpose.msra.mxu0 0.0
    %1075 = vmatpush.xpose.msra.mxu0 %v1058
    %1076 = vmatmul.f32.gmra.mxu0 %v1055
    %v1077 = vpop.f32.mrf.mxu0
    %v1078 = vadd.f32 0.0, %v1077
    %1079 = vdwg.mxu0
    %vm1080 = vcmask 57344
    %v1081 = vsel %vm1080, %v1078, -inf
    %1082 = vmax.xlane.f32.xlu0 %v1081
    %v1083 = vpop.xlane.xlu0 %1082
    %v1084 = vsub.f32 %v1078, %v1083
    %v1085 = vmul.f32 %v1084, 1.442695
    %v1086 = vpow.pop %v1085
    %v1087 = vsel %vm1080, %v1086, 0.0
    %1088 = vadd.xlane.f32.xlu0 %v1087
    %v1089 = vpop.xlane.xlu0 %1088
    %v1090 = vlog2.pop %v1089
    %v1091 = vmul.f32 %v1090, 0.6931472
    %v1092 = vadd.f32 %v1091, %v1083
    %v1093 = vsub.f32 %v1078, %v1092
    %vm1095 = vcmask 64512
    %v1097 = vsel %vm1095, %v1093, 0
    %1099 = vmatpush.msra.mxu0 0.0
    %1100 = vmatpush.msra.mxu0 0.0
    %1101 = vmatpush.msra.mxu0 0.0
    %1102 = vmatpush.msra.mxu0 0.0
    %1103 = vmatpush.msra.mxu0 0.0
    %1104 = vmatpush.msra.mxu0 0.0
    %1105 = vmatpush.msra.mxu0 0.0
    %1106 = vmatpush.msra.mxu0 0.0
    %1107 = vmatpush.msra.mxu0 0.0
    %1108 = vmatpush.msra.mxu0 0.0
    %1109 = vmatpush.msra.mxu0 0.0
    %1110 = vmatpush.msra.mxu0 0.0
    %1111 = vmatpush.msra.mxu0 0.0
    %1112 = vmatpush.msra.mxu0 0.0
    %1113 = vmatpush.msra.mxu0 0.0
    %1114 = vmatpush.msra.mxu0 %v998
    %1115 = vmatmul.f32.gmra.mxu0 %v1097
    %v1116 = vpop.f32.mrf.mxu0
    %v1117 = vadd.f32 0.0, %v1116
    %1118 = vdwg.mxu0
    %v1119 = vld [vmem:[#allocation5 + $0x78] sm:$0xff]
    %v1120 = vld [vmem:[#allocation5 + $0x80] sm:$0xff]
    %v1121 = vld [vmem:[#allocation5 + $0x88] sm:$0xff]
    %v1122 = vld [vmem:[#allocation5 + $0x90] sm:$0xff]
    %v1123 = vld [vmem:[#allocation5 + $0x98] sm:$0xff]
    %v1124 = vld [vmem:[#allocation5 + $0xa0] sm:$0xff]
    %v1125 = vld [vmem:[#allocation5 + $0xa8] sm:$0xff]
    %v1126 = vld [vmem:[#allocation5 + $0xb0] sm:$0xff]
    %v1128 = vsel %vm179, %v1117, 0
    %1130 = vmatpush.msra.mxu0 0.0
    %1131 = vmatpush.msra.mxu0 0.0
    %1132 = vmatpush.msra.mxu0 0.0
    %1133 = vmatpush.msra.mxu0 0.0
    %1134 = vmatpush.msra.mxu0 0.0
    %1135 = vmatpush.msra.mxu0 0.0
    %1136 = vmatpush.msra.mxu0 0.0
    %1137 = vmatpush.msra.mxu0 0.0
    %1138 = vmatpush.msra.mxu0 0.0
    %1139 = vmatpush.msra.mxu0 0.0
    %1140 = vmatpush.msra.mxu0 0.0
    %1141 = vmatpush.msra.mxu0 0.0
    %1142 = vmatpush.msra.mxu0 %v1126
    %1143 = vmatpush.msra.mxu0 %v1125
    %1144 = vmatpush.msra.mxu0 %v1124
    %1145 = vmatpush.msra.mxu0 %v1123
    %1146 = vmatmul.f32.gmra.mxu0 %v1128
    %v1147 = vpop.f32.mrf.mxu0
    %v1148 = vadd.f32 0.0, %v1147
    %1149 = vdwg.mxu0
    %1150 = vmatpush.msra.mxu0 0.0
    %1151 = vmatpush.msra.mxu0 0.0
    %1152 = vmatpush.msra.mxu0 0.0
    %1153 = vmatpush.msra.mxu0 0.0
    %1154 = vmatpush.msra.mxu0 0.0
    %1155 = vmatpush.msra.mxu0 0.0
    %1156 = vmatpush.msra.mxu0 0.0
    %1157 = vmatpush.msra.mxu0 0.0
    %1158 = vmatpush.msra.mxu0 0.0
    %1159 = vmatpush.msra.mxu0 0.0
    %1160 = vmatpush.msra.mxu0 0.0
    %1161 = vmatpush.msra.mxu0 0.0
    %1162 = vmatpush.msra.mxu0 %v1122
    %1163 = vmatpush.msra.mxu0 %v1121
    %1164 = vmatpush.msra.mxu0 %v1120
    %1165 = vmatpush.msra.mxu0 %v1119
    %1166 = vmatmul.f32.gmra.mxu0 %v973
    %v1167 = vpop.f32.mrf.mxu0
    %v1168 = vadd.f32 %v1148, %v1167
    %1169 = vdwg.mxu0
    %v1170 = vtanh.pop %v1168
    %v1171 = vld [vmem:[#allocation5 + $0xd8] sm:$0x1]
    %1173 = vrot.lane.b32.xlu0 %v1171, 20
    %v1174 = vpop.permute.xlu0 %1173
    %v1176 = vadd.f32 %v1168, %v1174
    %v1177 = vmul.f32 %v1176, 0.5
    %v1178 = vtanh.pop %v1177
    %v1179 = vmul.f32 %v1178, 0.5
    %v1180 = vadd.f32 %v1179, 0.5
    %v1181 = vld [vmem:[#allocation5 + $0xb8] sm:$0xff]
    %v1182 = vld [vmem:[#allocation5 + $0xc0] sm:$0xff]
    %v1183 = vld [vmem:[#allocation5 + $0xc8] sm:$0xff]
    %v1184 = vld [vmem:[#allocation5 + $0xd0] sm:$0xff]
    %v1186 = vsel %vm179, %v1170, 0
    %1188 = vmatpush.msra.mxu0 0.0
    %1189 = vmatpush.msra.mxu0 0.0
    %1190 = vmatpush.msra.mxu0 0.0
    %1191 = vmatpush.msra.mxu0 0.0
    %1192 = vmatpush.msra.mxu0 0.0
    %1193 = vmatpush.msra.mxu0 0.0
    %1194 = vmatpush.msra.mxu0 0.0
    %1195 = vmatpush.msra.mxu0 0.0
    %1196 = vmatpush.msra.mxu0 0.0
    %1197 = vmatpush.msra.mxu0 0.0
    %1198 = vmatpush.msra.mxu0 0.0
    %1199 = vmatpush.msra.mxu0 0.0
    %1200 = vmatpush.msra.mxu0 %v1184
    %1201 = vmatpush.msra.mxu0 %v1183
    %1202 = vmatpush.msra.mxu0 %v1182
    %1203 = vmatpush.msra.mxu0 %v1181
    %1204 = vmatmul.f32.gmra.mxu0 %v1186
    %v1205 = vpop.f32.mrf.mxu0
    %v1206 = vadd.f32 %v1171, %v1205
    %1207 = vdwg.mxu0
    %vm1208 = vcmask 90112
    %v1209 = vsel %vm1208, %v1206, -inf
    %1210 = vmax.xlane.f32.xlu0 %v1209
    %v1211 = vpop.xlane.xlu0 %1210
    %v1212 = vsub.f32 %v1206, %v1211
    %v1213 = vmul.f32 %v1212, 1.442695
    %v1214 = vpow.pop %v1213
    %v1215 = vsel %vm1208, %v1214, 0.0
    %1216 = vadd.xlane.f32.xlu0 %v1215
    %v1217 = vpop.xlane.xlu0 %1216
    %v1218 = vlog2.pop %v1217
    %v1219 = vmul.f32 %v1218, 0.6931472
    %v1220 = vadd.f32 %v1219, %v1211
    %v1221 = vsub.f32 %v1206, %v1220
    %1223 = vset.pattern.permute.xlu0 32
    %1224 = vperm.xlu0 %1223, %v1180
    %v1225 = vpop.permute.xlu0 %1224
    %v1227 = vmul.f32 %v1225, %v1221
    %v1228 = vsub.f32 1.0, %v1180
    %1230 = vset.pattern.permute.xlu0 32
    %1231 = vperm.xlu0 %1230, %v1228
    %v1232 = vpop.permute.xlu0 %1231
    %v1234 = vmul.f32 %v1232, %v1093
    %1236 = vrot.lane.b32.xlu0 %v1234, 12
    %v1237 = vpop.permute.xlu0 %1236
    %vm1239 = vcmask 97280
    %v1240 = vsel %vm1239, %v1227, %v1237
    %vm1241 = vcmask 155648
    %1242 = vst.msk [vmem:[#allocation8] sm:$0x1] %vm1241, %v1240
    // Predicated region
    $region14: #{main_model_forward.1} parent=1 // pred_check
      _
    $region15: #{main_model_forward.1} parent=1 // pred_check_branch
      %1244 = sbr.rel (0) target = $region17
    $region16: #{main_model_forward.1} parent=1 // pred_region
      %1246 = vsyncadd [#allocation7], 0
      %s1248 = sshll.u32 [#allocation8], 4
      %s1249 = int_to_ptr.vmem [resolvable:$true] %s1248
      %s1250 = sshll.u32 %s4, 4
      %s1251 = int_to_ptr.hbm [resolvable:$true] %s1250
      %1253 = dma.vmem_to_hbm [thread:$0]  %s1249, 16, %s1251, [#allocation7]
    $region17: #{main_model_forward.1} parent=1 // pred_fallthru
      _
    // Predicated region
    $region18: #{main_model_forward.1} parent=1 // pred_check
      _
    $region19: #{main_model_forward.1} parent=1 // pred_check_branch
      %1255 = sbr.rel (0) target = $region21
    $region20: #{main_model_forward.1} parent=1 // pred_region
      %1257 = dma.done [#allocation7], 16
    $region21: #{main_model_forward.1} parent=1 // pred_fallthru
      _
    %1258 = vsyncpa [#allocation6], 1
    %1259 = vsyncpa [#allocation7], 1

</llo_original>
